<compile_context>
chip_gen: v5e
topology: v5e:2x2
jax: 0.10.0
libtpu: 0.0.40
codegen_flags: <defaults>
</compile_context>

<pallas_src>
import math

import jax
import jax.numpy as jnp
from jax.experimental import pallas as pl
from jax.experimental.pallas import tpu as pltpu

_GRIDLESS_MAX_ROWS = 4096   # grid-less VMEM-resident path: a few MB live even at this size
_DEFAULT_BATCH_BLOCK = 512  # lane-tile for large N (multiple of 128; near HBM roofline)


# ------------------------------ in-kernel math ------------------------------

def _silu(x):
    return x * jax.nn.sigmoid(x)


def _layernorm_f(h, gamma, beta, eps=1e-5):
    # LayerNorm over the FEATURE axis, which is axis 0 in the transposed layout.
    # Reductions run over the true (unpadded) feature width, so mean/var are exact.
    mean = jnp.mean(h, axis=0, keepdims=True)
    var = jnp.mean(jnp.square(h - mean), axis=0, keepdims=True)
    return (h - mean) * jax.lax.rsqrt(var + eps) * gamma + beta


def _dot(a, b):
    return jnp.dot(a, b, preferred_element_type=jnp.float32)


# --------------------------- fused Cell_Unet kernel --------------------------

def _make_fused_kernel(n_enc, block_out_dims):
    """Whole Cell_Unet forward in one kernel body; activations are [feat, batch]."""
    n_blocks = len(block_out_dims)
    offs, o = [], 0
    for d in block_out_dims:
        offs.append(o)
        o += d

    def kernel(x_ref, t_ref, freq_ref, tw1, tb1, tw2, tb2, ew_cat, eb_cat, *rest):
        it = iter(rest)
        blocks = [tuple(next(it) for _ in range(3)) for _ in range(n_blocks)]  # (fc_w^T, ln_g, ln_b)
        o1w = next(it); o1b = next(it); ng = next(it); nb = next(it)
        o2w = next(it); o2b = next(it)
        o_ref = next(it)                                  # [input_dim, TN] lane-dense output

        # ---- sinusoidal timestep embedding, computed in-kernel (EUP), batch on lanes ----
        args = freq_ref[...] * t_ref[...]                                   # [half, TN]
        te = jnp.concatenate([jnp.cos(args), jnp.sin(args)], axis=0)        # [h0, TN]

        # ---- TimeEmbedding MLP: Linear -> SiLU -> Linear; SiLU(emb) shared by all blocks ----
        e = _dot(tw1[...], te) + tb1[...]
        e = _dot(tw2[...], _silu(e)) + tb2[...]
        silu_emb = _silu(e)                                                 # [h0, TN]

        # ---- every block's emb projection + fused (fc_b + emb_b) bias in ONE matmul ----
        emb_all = _dot(ew_cat[...], silu_emb) + eb_cat[...]                 # [sum(out), TN]

        def resblock(h, idx):
            fw, g, b = blocks[idx]
            lo = offs[idx]
            z = _dot(fw[...], h) + emb_all[lo:lo + block_out_dims[idx], :]
            return _silu(_layernorm_f(z, g[...], b[...]))

        h = x_ref[...]
        history = []
        for bi in range(n_enc):                      # encoder
            h = resblock(h, bi)
            history.append(h)
        history.pop()
        for bi in range(n_enc, n_blocks):            # decoder + U-Net skip add
            h = resblock(h, bi) + history.pop()

        # ---- output head: out1 -> LayerNorm -> SiLU -> out2 ([input_dim, TN], lane-dense) ----
        z = _dot(o1w[...], h) + o1b[...]
        z = _silu(_layernorm_f(z, ng[...], nb[...]))
        o_ref[...] = _dot(o2w[...], z) + o2b[...]

    return kernel


# ------------------------- parameter init & packing -------------------------

def _init_linear(key, fan_in, fan_out):
    k1, k2 = jax.random.split(key)
    bound = 1.0 / math.sqrt(fan_in)
    w = jax.random.uniform(k1, (fan_in, fan_out), jnp.float32, -bound, bound)
    b = jax.random.uniform(k2, (1, fan_out), jnp.float32, -bound, bound)
    return w, b


def _init_resblock(key, in_f, out_f, time_f):
    k1, k2 = jax.random.split(key)
    fw, fb = _init_linear(k1, in_f, out_f)
    ew, eb = _init_linear(k2, time_f, out_f)
    return dict(fc_w=fw, fc_b=fb, emb_w=ew, emb_b=eb,
                ln_g=jnp.ones((1, out_f), jnp.float32),
                ln_b=jnp.zeros((1, out_f), jnp.float32))


def init_cell_unet(key, input_dim, hidden_num):
    h0, h1 = hidden_num[0], hidden_num[1]
    keys = jax.random.split(key, 16)
    ki = iter(range(16))
    tw1, tb1 = _init_linear(keys[next(ki)], h0, h0)
    tw2, tb2 = _init_linear(keys[next(ki)], h0, h0)

    layers = [_init_resblock(keys[next(ki)], input_dim, h0, h0)]
    for i in range(len(hidden_num) - 1):
        layers.append(_init_resblock(keys[next(ki)], hidden_num[i], hidden_num[i + 1], h0))
    reverse_layers = []
    for i in reversed(range(len(hidden_num) - 1)):
        reverse_layers.append(_init_resblock(keys[next(ki)], hidden_num[i + 1], hidden_num[i], h0))

    out_dim = int(h1 * 2)
    o1w, o1b = _init_linear(keys[next(ki)], h0, out_dim)
    o2w, o2b = _init_linear(keys[next(ki)], out_dim, input_dim)
    return dict(h0=h0, input_dim=input_dim,
                time_w1=tw1, time_b1=tb1, time_w2=tw2, time_b2=tb2,
                layers=layers, reverse_layers=reverse_layers,
                out1_w=o1w, out1_b=o1b,
                norm_out_g=jnp.ones((1, out_dim), jnp.float32),
                norm_out_b=jnp.zeros((1, out_dim), jnp.float32),
                out2_w=o2w, out2_b=o2b)


def pack_params(p):
    """Host-side prep for the fused kernel: transpose every weight to [out, in] and every
    bias/gamma/beta to a [out, 1] column (batch-on-lanes layout), concatenate all per-block
    emb projections + fused (fc_b + emb_b) biases into one matrix, and precompute the
    sinusoidal frequency column used for the in-kernel timestep embedding."""
    h0 = p["h0"]
    assert h0 % 2 == 0, "hidden_num[0] must be even for the sinusoidal embedding"
    half = h0 // 2
    freqs = jnp.exp(
        -math.log(10000.0) * jnp.arange(half, dtype=jnp.float32) / half
    ).reshape(half, 1)

    blocks = p["layers"] + p["reverse_layers"]
    ew_cat = jnp.concatenate([b["emb_w"].T for b in blocks], axis=0)                # [sum(out), h0]
    eb_cat = jnp.concatenate([(b["fc_b"] + b["emb_b"]).T for b in blocks], axis=0)  # [sum(out), 1]

    weights = [freqs,
               p["time_w1"].T, p["time_b1"].T, p["time_w2"].T, p["time_b2"].T,
               ew_cat, eb_cat]
    for b in blocks:
        weights += [b["fc_w"].T, b["ln_g"].T, b["ln_b"].T]
    weights += [p["out1_w"].T, p["out1_b"].T, p["norm_out_g"].T, p["norm_out_b"].T,
                p["out2_w"].T, p["out2_b"].T]

    return dict(input_dim=p["input_dim"], h0=h0,
                n_enc=len(p["layers"]),
                block_out_dims=[int(b["fc_w"].shape[1]) for b in blocks],
                weights=weights)


# ------------------------------ forward pass ---------------------------------

def cell_unet_forward(packed, x, t, *, batch_block=None, core_parallel=False):
    """Cell_Unet.forward(x, t) as one fused Pallas kernel (batch on the lane axis).

    batch_block=None -> auto: grid-less (all operands VMEM-resident) for
                        N <= _GRIDLESS_MAX_ROWS, else lane-tiled grid with
                        tile=_DEFAULT_BATCH_BLOCK.
    batch_block=TN   -> lane-tiled grid; TN must be a multiple of 128 (ragged N is
                        zero-padded up to a tile multiple and sliced off afterwards).
    core_parallel    -> mark the batch grid axis pltpu.CORE_PARALLEL (v7x dual
                        TensorCore). Leave False on single-TC chips (v5e / v6e).
    """
    n = x.shape[0]
    input_dim = packed["input_dim"]
    x_t = x.astype(jnp.float32).T                      # [input_dim, N]  (batch -> lanes)
    t_row = t.astype(jnp.float32).reshape(1, n)        # [1, N]

    kernel = _make_fused_kernel(packed["n_enc"], packed["block_out_dims"])
    weights = list(packed["weights"])

    if batch_block is None:
        batch_block = 0 if n <= _GRIDLESS_MAX_ROWS else _DEFAULT_BATCH_BLOCK

    if batch_block <= 0 or batch_block >= n:
        # Grid-less: whole batch resident in VMEM. Guarded by _GRIDLESS_MAX_ROWS so the
        # live set stays well under v5e's 16 MiB / v7x's 32 MiB default scoped-VMEM limits.
        vmem = pl.BlockSpec(memory_space=pltpu.MemorySpace.VMEM)
        operands = [x_t, t_row] + weights
        out = pl.pallas_call(
            kernel,
            out_shape=jax.ShapeDtypeStruct((input_dim, n), jnp.float32),
            in_specs=[vmem] * len(operands),
            out_specs=pl.BlockSpec(memory_space=pltpu.MemorySpace.VMEM),
        )(*operands)
        return out.T

    tn = batch_block
    assert tn % 128 == 0, "batch_block must be a multiple of 128 (lane-dense tiles)"
    n_pad = ((n + tn - 1) // tn) * tn
    if n_pad != n:
        x_t = jnp.pad(x_t, ((0, 0), (0, n_pad - n)))
        t_row = jnp.pad(t_row, ((0, 0), (0, n_pad - n)))

    col = lambda a: pl.BlockSpec((a.shape[0], tn), lambda i: (0, i))     # lane-tiled on batch
    rep = lambda a: pl.BlockSpec(a.shape, lambda i: (0, 0))              # weights: replicated
    operands = [x_t, t_row] + weights
    sem = pltpu.CORE_PARALLEL if core_parallel else "parallel"
    out = pl.pallas_call(
        kernel,
        out_shape=jax.ShapeDtypeStruct((input_dim, n_pad), jnp.float32),
        grid=(n_pad // tn,),
        in_specs=[col(x_t), col(t_row)] + [rep(w) for w in weights],
        out_specs=pl.BlockSpec((input_dim, tn), lambda i: (0, i)),
        compiler_params=pltpu.CompilerParams(dimension_semantics=(sem,)),
    )(*operands)
    return out[:, :n].T


# ---------------------------- pure-JAX reference ----------------------------

def timestep_embedding(t, dim, max_period=10000):
    half = dim // 2
    freqs = jnp.exp(-math.log(max_period) * jnp.arange(half, dtype=jnp.float32) / half)
    args = t.astype(jnp.float32)[:, None] * freqs[None, :]
    emb = jnp.concatenate([jnp.cos(args), jnp.sin(args)], axis=-1)
    if dim % 2:
        emb = jnp.concatenate([emb, jnp.zeros_like(emb[:, :1])], axis=-1)
    return emb


def _ref_cell_unet(p, x, t):
    hp = jax.lax.Precision.HIGHEST
    d = lambda a, b: jnp.dot(a, b, precision=hp)
    silu = lambda v: v * jax.nn.sigmoid(v)

    def ln(h, g, b):
        m = h.mean(-1, keepdims=True)
        v = ((h - m) ** 2).mean(-1, keepdims=True)
        return (h - m) / jnp.sqrt(v + 1e-5) * g + b

    te = timestep_embedding(t, p["h0"])
    emb = d(silu(d(te, p["time_w1"]) + p["time_b1"]), p["time_w2"]) + p["time_b2"]
    h = x.astype(jnp.float32)
    hist = []
    for blk in p["layers"]:
        z = d(h, blk["fc_w"]) + blk["fc_b"] + d(silu(emb), blk["emb_w"]) + blk["emb_b"]
        h = silu(ln(z, blk["ln_g"], blk["ln_b"]))
        hist.append(h)
    hist.pop()
    for blk in p["reverse_layers"]:
        z = d(h, blk["fc_w"]) + blk["fc_b"] + d(silu(emb), blk["emb_w"]) + blk["emb_b"]
        h = silu(ln(z, blk["ln_g"], blk["ln_b"])) + hist.pop()
    z = d(h, p["out1_w"]) + p["out1_b"]
    z = silu(ln(z, p["norm_out_g"], p["norm_out_b"]))
    return d(z, p["out2_w"]) + p["out2_b"]


# ----------------------------------- main -----------------------------------

if __name__ == "__main__":
    INPUT_DIM = 4
    HIDDEN = (32, 16, 8, 8)

    key = jax.random.PRNGKey(0)
    kp, kx, kt, kx2, kt2 = jax.random.split(key, 5)

    params = init_cell_unet(kp, INPUT_DIM, list(HIDDEN))
    packed = pack_params(params)

    # --- small batch: single grid-less fused launch, everything VMEM-resident ----
    N = 8
    x = jax.random.normal(kx, (N, INPUT_DIM), jnp.float32)
    t = jax.random.uniform(kt, (N,), jnp.float32, 0.0, 1000.0)
    out = jax.block_until_ready(cell_unet_forward(packed, x, t))
    ref = _ref_cell_unet(params, x, t)
    assert out.shape == (N, INPUT_DIM)
    assert jnp.allclose(out, ref, atol=2e-3, rtol=2e-3), "mismatch (fused, grid-less)"

    # --- larger ragged batch: lane-tiled grid (300 -> padded to 384, 3 tiles) ----
    N2, TN = 300, 128
    x2 = jax.random.normal(kx2, (N2, INPUT_DIM), jnp.float32)
    t2 = jax.random.uniform(kt2, (N2,), jnp.float32, 0.0, 1000.0)
    out2 = jax.block_until_ready(cell_unet_forward(packed, x2, t2, batch_block=TN))
    ref2 = _ref_cell_unet(params, x2, t2)
    assert out2.shape == (N2, INPUT_DIM)
    assert jnp.allclose(out2, ref2, atol=2e-3, rtol=2e-3), "mismatch (fused, lane-tiled)"

    print("KERNEL_OK")
</pallas_src>

<mosaic_0001>
module attributes {stable_mosaic.version = 11 : i64} {
  func.func @kernel(%arg0: memref<4x8xf32, #tpu.memory_space<vmem>>, %arg1: memref<1x8xf32, #tpu.memory_space<vmem>>, %arg2: memref<16x1xf32, #tpu.memory_space<vmem>>, %arg3: memref<32x32xf32, #tpu.memory_space<vmem>>, %arg4: memref<32x1xf32, #tpu.memory_space<vmem>>, %arg5: memref<32x32xf32, #tpu.memory_space<vmem>>, %arg6: memref<32x1xf32, #tpu.memory_space<vmem>>, %arg7: memref<120x32xf32, #tpu.memory_space<vmem>>, %arg8: memref<120x1xf32, #tpu.memory_space<vmem>>, %arg9: memref<32x4xf32, #tpu.memory_space<vmem>>, %arg10: memref<32x1xf32, #tpu.memory_space<vmem>>, %arg11: memref<32x1xf32, #tpu.memory_space<vmem>>, %arg12: memref<16x32xf32, #tpu.memory_space<vmem>>, %arg13: memref<16x1xf32, #tpu.memory_space<vmem>>, %arg14: memref<16x1xf32, #tpu.memory_space<vmem>>, %arg15: memref<8x16xf32, #tpu.memory_space<vmem>>, %arg16: memref<8x1xf32, #tpu.memory_space<vmem>>, %arg17: memref<8x1xf32, #tpu.memory_space<vmem>>, %arg18: memref<8x8xf32, #tpu.memory_space<vmem>>, %arg19: memref<8x1xf32, #tpu.memory_space<vmem>>, %arg20: memref<8x1xf32, #tpu.memory_space<vmem>>, %arg21: memref<8x8xf32, #tpu.memory_space<vmem>>, %arg22: memref<8x1xf32, #tpu.memory_space<vmem>>, %arg23: memref<8x1xf32, #tpu.memory_space<vmem>>, %arg24: memref<16x8xf32, #tpu.memory_space<vmem>>, %arg25: memref<16x1xf32, #tpu.memory_space<vmem>>, %arg26: memref<16x1xf32, #tpu.memory_space<vmem>>, %arg27: memref<32x16xf32, #tpu.memory_space<vmem>>, %arg28: memref<32x1xf32, #tpu.memory_space<vmem>>, %arg29: memref<32x1xf32, #tpu.memory_space<vmem>>, %arg30: memref<32x32xf32, #tpu.memory_space<vmem>>, %arg31: memref<32x1xf32, #tpu.memory_space<vmem>>, %arg32: memref<32x1xf32, #tpu.memory_space<vmem>>, %arg33: memref<32x1xf32, #tpu.memory_space<vmem>>, %arg34: memref<4x32xf32, #tpu.memory_space<vmem>>, %arg35: memref<4x1xf32, #tpu.memory_space<vmem>>, %arg36: memref<4x8xf32, #tpu.memory_space<vmem>>) attributes {dimension_semantics = [], scalar_prefetch = 0 : i64, scratch_operands = 0 : i64, tpu.core_type = #tpu.core_type<tc>} {
    %c0 = arith.constant 0 : index
    %c0_0 = arith.constant 0 : index
    %0 = vector.load %arg2[%c0, %c0_0] : memref<16x1xf32, #tpu.memory_space<vmem>>, vector<16x1xf32>
    %c0_1 = arith.constant 0 : index
    %c0_2 = arith.constant 0 : index
    %1 = vector.load %arg1[%c0_1, %c0_2] : memref<1x8xf32, #tpu.memory_space<vmem>>, vector<1x8xf32>
    %2 = vector.broadcast %0 : vector<16x1xf32> to vector<16x8xf32>
    %3 = vector.broadcast %1 : vector<1x8xf32> to vector<16x8xf32>
    %4 = arith.mulf %2, %3 : vector<16x8xf32>
    %5 = math.cos %4 : vector<16x8xf32>
    %6 = math.sin %4 : vector<16x8xf32>
    %7 = tpu.concatenate %5, %6 in 0 : vector<16x8xf32>, vector<16x8xf32> -> vector<32x8xf32>
    %c0_3 = arith.constant 0 : index
    %c0_4 = arith.constant 0 : index
    %8 = vector.load %arg3[%c0_3, %c0_4] : memref<32x32xf32, #tpu.memory_space<vmem>>, vector<32x32xf32>
    %cst = arith.constant dense<0.000000e+00> : vector<32x8xf32>
    %9 = tpu.matmul %8, %7, %cst {dimension_numbers = #tpu.dot_dimension_numbers<[1], [0], [0], [1], [0, 0, 1, 1], [], []>} : vector<32x32xf32>, vector<32x8xf32>, vector<32x8xf32> -> vector<32x8xf32>
    %c0_5 = arith.constant 0 : index
    %c0_6 = arith.constant 0 : index
    %10 = vector.load %arg4[%c0_5, %c0_6] : memref<32x1xf32, #tpu.memory_space<vmem>>, vector<32x1xf32>
    %11 = vector.broadcast %10 : vector<32x1xf32> to vector<32x8xf32>
    %12 = arith.addf %9, %11 : vector<32x8xf32>
    %c0_7 = arith.constant 0 : index
    %c0_8 = arith.constant 0 : index
    %13 = vector.load %arg5[%c0_7, %c0_8] : memref<32x32xf32, #tpu.memory_space<vmem>>, vector<32x32xf32>
    %14 = arith.negf %12 : vector<32x8xf32>
    %15 = math.exp %14 : vector<32x8xf32>
    %cst_9 = arith.constant 1.000000e+00 : f32
    %16 = vector.broadcast %cst_9 : f32 to vector<32x8xf32>
    %17 = arith.addf %16, %15 : vector<32x8xf32>
    %18 = arith.divf %16, %17 : vector<32x8xf32>
    %19 = arith.mulf %12, %18 : vector<32x8xf32>
    %cst_10 = arith.constant dense<0.000000e+00> : vector<32x8xf32>
    %20 = tpu.matmul %13, %19, %cst_10 {dimension_numbers = #tpu.dot_dimension_numbers<[1], [0], [0], [1], [0, 0, 1, 1], [], []>} : vector<32x32xf32>, vector<32x8xf32>, vector<32x8xf32> -> vector<32x8xf32>
    %c0_11 = arith.constant 0 : index
    %c0_12 = arith.constant 0 : index
    %21 = vector.load %arg6[%c0_11, %c0_12] : memref<32x1xf32, #tpu.memory_space<vmem>>, vector<32x1xf32>
    %22 = vector.broadcast %21 : vector<32x1xf32> to vector<32x8xf32>
    %23 = arith.addf %20, %22 : vector<32x8xf32>
    %24 = arith.negf %23 : vector<32x8xf32>
    %25 = math.exp %24 : vector<32x8xf32>
    %cst_13 = arith.constant 1.000000e+00 : f32
    %26 = vector.broadcast %cst_13 : f32 to vector<32x8xf32>
    %27 = arith.addf %26, %25 : vector<32x8xf32>
    %28 = arith.divf %26, %27 : vector<32x8xf32>
    %29 = arith.mulf %23, %28 : vector<32x8xf32>
    %c0_14 = arith.constant 0 : index
    %c0_15 = arith.constant 0 : index
    %30 = vector.load %arg7[%c0_14, %c0_15] : memref<120x32xf32, #tpu.memory_space<vmem>>, vector<120x32xf32>
    %cst_16 = arith.constant dense<0.000000e+00> : vector<120x8xf32>
    %31 = tpu.matmul %30, %29, %cst_16 {dimension_numbers = #tpu.dot_dimension_numbers<[1], [0], [0], [1], [0, 0, 1, 1], [], []>} : vector<120x32xf32>, vector<32x8xf32>, vector<120x8xf32> -> vector<120x8xf32>
    %c0_17 = arith.constant 0 : index
    %c0_18 = arith.constant 0 : index
    %32 = vector.load %arg8[%c0_17, %c0_18] : memref<120x1xf32, #tpu.memory_space<vmem>>, vector<120x1xf32>
    %33 = vector.broadcast %32 : vector<120x1xf32> to vector<120x8xf32>
    %34 = arith.addf %31, %33 : vector<120x8xf32>
    %c0_19 = arith.constant 0 : index
    %c0_20 = arith.constant 0 : index
    %35 = vector.load %arg0[%c0_19, %c0_20] : memref<4x8xf32, #tpu.memory_space<vmem>>, vector<4x8xf32>
    %c0_21 = arith.constant 0 : index
    %c0_22 = arith.constant 0 : index
    %36 = vector.load %arg9[%c0_21, %c0_22] : memref<32x4xf32, #tpu.memory_space<vmem>>, vector<32x4xf32>
    %cst_23 = arith.constant dense<0.000000e+00> : vector<32x8xf32>
    %37 = tpu.matmul %36, %35, %cst_23 {dimension_numbers = #tpu.dot_dimension_numbers<[1], [0], [0], [1], [0, 0, 1, 1], [], []>} : vector<32x4xf32>, vector<4x8xf32>, vector<32x8xf32> -> vector<32x8xf32>
    %38 = vector.extract_strided_slice %34 {offsets = [0, 0], sizes = [32, 8], strides = [1, 1]} : vector<120x8xf32> to vector<32x8xf32>
    %39 = arith.addf %37, %38 : vector<32x8xf32>
    %c0_24 = arith.constant 0 : index
    %c0_25 = arith.constant 0 : index
    %40 = vector.load %arg10[%c0_24, %c0_25] : memref<32x1xf32, #tpu.memory_space<vmem>>, vector<32x1xf32>
    %c0_26 = arith.constant 0 : index
    %c0_27 = arith.constant 0 : index
    %41 = vector.load %arg11[%c0_26, %c0_27] : memref<32x1xf32, #tpu.memory_space<vmem>>, vector<32x1xf32>
    %cst_28 = arith.constant dense<0.000000e+00> : vector<8xf32>
    %42 = vector.multi_reduction <add>, %39, %cst_28 [0] : vector<32x8xf32> to vector<8xf32>
    %43 = vector.shape_cast %42 : vector<8xf32> to vector<1x8xf32>
    %cst_29 = arith.constant 3.200000e+01 : f32
    %44 = vector.broadcast %cst_29 : f32 to vector<1x8xf32>
    %45 = arith.divf %43, %44 : vector<1x8xf32>
    %46 = vector.broadcast %45 : vector<1x8xf32> to vector<32x8xf32>
    %47 = arith.subf %39, %46 : vector<32x8xf32>
    %48 = arith.mulf %47, %47 : vector<32x8xf32>
    %cst_30 = arith.constant dense<0.000000e+00> : vector<8xf32>
    %49 = vector.multi_reduction <add>, %48, %cst_30 [0] : vector<32x8xf32> to vector<8xf32>
    %50 = vector.shape_cast %49 : vector<8xf32> to vector<1x8xf32>
    %cst_31 = arith.constant 3.200000e+01 : f32
    %51 = vector.broadcast %cst_31 : f32 to vector<1x8xf32>
    %52 = arith.divf %50, %51 : vector<1x8xf32>
    %53 = vector.broadcast %45 : vector<1x8xf32> to vector<32x8xf32>
    %54 = arith.subf %39, %53 : vector<32x8xf32>
    %cst_32 = arith.constant 9.99999974E-6 : f32
    %55 = vector.broadcast %cst_32 : f32 to vector<1x8xf32>
    %56 = arith.addf %52, %55 : vector<1x8xf32>
    %57 = math.rsqrt %56 : vector<1x8xf32>
    %58 = vector.broadcast %57 : vector<1x8xf32> to vector<32x8xf32>
    %59 = arith.mulf %54, %58 : vector<32x8xf32>
    %60 = vector.broadcast %40 : vector<32x1xf32> to vector<32x8xf32>
    %61 = arith.mulf %59, %60 : vector<32x8xf32>
    %62 = vector.broadcast %41 : vector<32x1xf32> to vector<32x8xf32>
    %63 = arith.addf %61, %62 : vector<32x8xf32>
    %64 = arith.negf %63 : vector<32x8xf32>
    %65 = math.exp %64 : vector<32x8xf32>
    %cst_33 = arith.constant 1.000000e+00 : f32
    %66 = vector.broadcast %cst_33 : f32 to vector<32x8xf32>
    %67 = arith.addf %66, %65 : vector<32x8xf32>
    %68 = arith.divf %66, %67 : vector<32x8xf32>
    %69 = arith.mulf %63, %68 : vector<32x8xf32>
    %c0_34 = arith.constant 0 : index
    %c0_35 = arith.constant 0 : index
    %70 = vector.load %arg12[%c0_34, %c0_35] : memref<16x32xf32, #tpu.memory_space<vmem>>, vector<16x32xf32>
    %cst_36 = arith.constant dense<0.000000e+00> : vector<16x8xf32>
    %71 = tpu.matmul %70, %69, %cst_36 {dimension_numbers = #tpu.dot_dimension_numbers<[1], [0], [0], [1], [0, 0, 1, 1], [], []>} : vector<16x32xf32>, vector<32x8xf32>, vector<16x8xf32> -> vector<16x8xf32>
    %72 = vector.extract_strided_slice %34 {offsets = [32, 0], sizes = [16, 8], strides = [1, 1]} : vector<120x8xf32> to vector<16x8xf32>
    %73 = arith.addf %71, %72 : vector<16x8xf32>
    %c0_37 = arith.constant 0 : index
    %c0_38 = arith.constant 0 : index
    %74 = vector.load %arg13[%c0_37, %c0_38] : memref<16x1xf32, #tpu.memory_space<vmem>>, vector<16x1xf32>
    %c0_39 = arith.constant 0 : index
    %c0_40 = arith.constant 0 : index
    %75 = vector.load %arg14[%c0_39, %c0_40] : memref<16x1xf32, #tpu.memory_space<vmem>>, vector<16x1xf32>
    %cst_41 = arith.constant dense<0.000000e+00> : vector<8xf32>
    %76 = vector.multi_reduction <add>, %73, %cst_41 [0] : vector<16x8xf32> to vector<8xf32>
    %77 = vector.shape_cast %76 : vector<8xf32> to vector<1x8xf32>
    %cst_42 = arith.constant 1.600000e+01 : f32
    %78 = vector.broadcast %cst_42 : f32 to vector<1x8xf32>
    %79 = arith.divf %77, %78 : vector<1x8xf32>
    %80 = vector.broadcast %79 : vector<1x8xf32> to vector<16x8xf32>
    %81 = arith.subf %73, %80 : vector<16x8xf32>
    %82 = arith.mulf %81, %81 : vector<16x8xf32>
    %cst_43 = arith.constant dense<0.000000e+00> : vector<8xf32>
    %83 = vector.multi_reduction <add>, %82, %cst_43 [0] : vector<16x8xf32> to vector<8xf32>
    %84 = vector.shape_cast %83 : vector<8xf32> to vector<1x8xf32>
    %cst_44 = arith.constant 1.600000e+01 : f32
    %85 = vector.broadcast %cst_44 : f32 to vector<1x8xf32>
    %86 = arith.divf %84, %85 : vector<1x8xf32>
    %87 = vector.broadcast %79 : vector<1x8xf32> to vector<16x8xf32>
    %88 = arith.subf %73, %87 : vector<16x8xf32>
    %cst_45 = arith.constant 9.99999974E-6 : f32
    %89 = vector.broadcast %cst_45 : f32 to vector<1x8xf32>
    %90 = arith.addf %86, %89 : vector<1x8xf32>
    %91 = math.rsqrt %90 : vector<1x8xf32>
    %92 = vector.broadcast %91 : vector<1x8xf32> to vector<16x8xf32>
    %93 = arith.mulf %88, %92 : vector<16x8xf32>
    %94 = vector.broadcast %74 : vector<16x1xf32> to vector<16x8xf32>
    %95 = arith.mulf %93, %94 : vector<16x8xf32>
    %96 = vector.broadcast %75 : vector<16x1xf32> to vector<16x8xf32>
    %97 = arith.addf %95, %96 : vector<16x8xf32>
    %98 = arith.negf %97 : vector<16x8xf32>
    %99 = math.exp %98 : vector<16x8xf32>
    %cst_46 = arith.constant 1.000000e+00 : f32
    %100 = vector.broadcast %cst_46 : f32 to vector<16x8xf32>
    %101 = arith.addf %100, %99 : vector<16x8xf32>
    %102 = arith.divf %100, %101 : vector<16x8xf32>
    %103 = arith.mulf %97, %102 : vector<16x8xf32>
    %c0_47 = arith.constant 0 : index
    %c0_48 = arith.constant 0 : index
    %104 = vector.load %arg15[%c0_47, %c0_48] : memref<8x16xf32, #tpu.memory_space<vmem>>, vector<8x16xf32>
    %cst_49 = arith.constant dense<0.000000e+00> : vector<8x8xf32>
    %105 = tpu.matmul %104, %103, %cst_49 {dimension_numbers = #tpu.dot_dimension_numbers<[1], [0], [0], [1], [0, 0, 1, 1], [], []>} : vector<8x16xf32>, vector<16x8xf32>, vector<8x8xf32> -> vector<8x8xf32>
    %106 = vector.extract_strided_slice %34 {offsets = [48, 0], sizes = [8, 8], strides = [1, 1]} : vector<120x8xf32> to vector<8x8xf32>
    %107 = arith.addf %105, %106 : vector<8x8xf32>
    %c0_50 = arith.constant 0 : index
    %c0_51 = arith.constant 0 : index
    %108 = vector.load %arg16[%c0_50, %c0_51] : memref<8x1xf32, #tpu.memory_space<vmem>>, vector<8x1xf32>
    %c0_52 = arith.constant 0 : index
    %c0_53 = arith.constant 0 : index
    %109 = vector.load %arg17[%c0_52, %c0_53] : memref<8x1xf32, #tpu.memory_space<vmem>>, vector<8x1xf32>
    %cst_54 = arith.constant dense<0.000000e+00> : vector<8xf32>
    %110 = vector.multi_reduction <add>, %107, %cst_54 [0] : vector<8x8xf32> to vector<8xf32>
    %111 = vector.shape_cast %110 : vector<8xf32> to vector<1x8xf32>
    %cst_55 = arith.constant 8.000000e+00 : f32
    %112 = vector.broadcast %cst_55 : f32 to vector<1x8xf32>
    %113 = arith.divf %111, %112 : vector<1x8xf32>
    %114 = vector.broadcast %113 : vector<1x8xf32> to vector<8x8xf32>
    %115 = arith.subf %107, %114 : vector<8x8xf32>
    %116 = arith.mulf %115, %115 : vector<8x8xf32>
    %cst_56 = arith.constant dense<0.000000e+00> : vector<8xf32>
    %117 = vector.multi_reduction <add>, %116, %cst_56 [0] : vector<8x8xf32> to vector<8xf32>
    %118 = vector.shape_cast %117 : vector<8xf32> to vector<1x8xf32>
    %cst_57 = arith.constant 8.000000e+00 : f32
    %119 = vector.broadcast %cst_57 : f32 to vector<1x8xf32>
    %120 = arith.divf %118, %119 : vector<1x8xf32>
    %121 = vector.broadcast %113 : vector<1x8xf32> to vector<8x8xf32>
    %122 = arith.subf %107, %121 : vector<8x8xf32>
    %cst_58 = arith.constant 9.99999974E-6 : f32
    %123 = vector.broadcast %cst_58 : f32 to vector<1x8xf32>
    %124 = arith.addf %120, %123 : vector<1x8xf32>
    %125 = math.rsqrt %124 : vector<1x8xf32>
    %126 = vector.broadcast %125 : vector<1x8xf32> to vector<8x8xf32>
    %127 = arith.mulf %122, %126 : vector<8x8xf32>
    %128 = vector.broadcast %108 : vector<8x1xf32> to vector<8x8xf32>
    %129 = arith.mulf %127, %128 : vector<8x8xf32>
    %130 = vector.broadcast %109 : vector<8x1xf32> to vector<8x8xf32>
    %131 = arith.addf %129, %130 : vector<8x8xf32>
    %132 = arith.negf %131 : vector<8x8xf32>
    %133 = math.exp %132 : vector<8x8xf32>
    %cst_59 = arith.constant 1.000000e+00 : f32
    %134 = vector.broadcast %cst_59 : f32 to vector<8x8xf32>
    %135 = arith.addf %134, %133 : vector<8x8xf32>
    %136 = arith.divf %134, %135 : vector<8x8xf32>
    %137 = arith.mulf %131, %136 : vector<8x8xf32>
    %c0_60 = arith.constant 0 : index
    %c0_61 = arith.constant 0 : index
    %138 = vector.load %arg18[%c0_60, %c0_61] : memref<8x8xf32, #tpu.memory_space<vmem>>, vector<8x8xf32>
    %cst_62 = arith.constant dense<0.000000e+00> : vector<8x8xf32>
    %139 = tpu.matmul %138, %137, %cst_62 {dimension_numbers = #tpu.dot_dimension_numbers<[1], [0], [0], [1], [0, 0, 1, 1], [], []>} : vector<8x8xf32>, vector<8x8xf32>, vector<8x8xf32> -> vector<8x8xf32>
    %140 = vector.extract_strided_slice %34 {offsets = [56, 0], sizes = [8, 8], strides = [1, 1]} : vector<120x8xf32> to vector<8x8xf32>
    %141 = arith.addf %139, %140 : vector<8x8xf32>
    %c0_63 = arith.constant 0 : index
    %c0_64 = arith.constant 0 : index
    %142 = vector.load %arg19[%c0_63, %c0_64] : memref<8x1xf32, #tpu.memory_space<vmem>>, vector<8x1xf32>
    %c0_65 = arith.constant 0 : index
    %c0_66 = arith.constant 0 : index
    %143 = vector.load %arg20[%c0_65, %c0_66] : memref<8x1xf32, #tpu.memory_space<vmem>>, vector<8x1xf32>
    %cst_67 = arith.constant dense<0.000000e+00> : vector<8xf32>
    %144 = vector.multi_reduction <add>, %141, %cst_67 [0] : vector<8x8xf32> to vector<8xf32>
    %145 = vector.shape_cast %144 : vector<8xf32> to vector<1x8xf32>
    %cst_68 = arith.constant 8.000000e+00 : f32
    %146 = vector.broadcast %cst_68 : f32 to vector<1x8xf32>
    %147 = arith.divf %145, %146 : vector<1x8xf32>
    %148 = vector.broadcast %147 : vector<1x8xf32> to vector<8x8xf32>
    %149 = arith.subf %141, %148 : vector<8x8xf32>
    %150 = arith.mulf %149, %149 : vector<8x8xf32>
    %cst_69 = arith.constant dense<0.000000e+00> : vector<8xf32>
    %151 = vector.multi_reduction <add>, %150, %cst_69 [0] : vector<8x8xf32> to vector<8xf32>
    %152 = vector.shape_cast %151 : vector<8xf32> to vector<1x8xf32>
    %cst_70 = arith.constant 8.000000e+00 : f32
    %153 = vector.broadcast %cst_70 : f32 to vector<1x8xf32>
    %154 = arith.divf %152, %153 : vector<1x8xf32>
    %155 = vector.broadcast %147 : vector<1x8xf32> to vector<8x8xf32>
    %156 = arith.subf %141, %155 : vector<8x8xf32>
    %cst_71 = arith.constant 9.99999974E-6 : f32
    %157 = vector.broadcast %cst_71 : f32 to vector<1x8xf32>
    %158 = arith.addf %154, %157 : vector<1x8xf32>
    %159 = math.rsqrt %158 : vector<1x8xf32>
    %160 = vector.broadcast %159 : vector<1x8xf32> to vector<8x8xf32>
    %161 = arith.mulf %156, %160 : vector<8x8xf32>
    %162 = vector.broadcast %142 : vector<8x1xf32> to vector<8x8xf32>
    %163 = arith.mulf %161, %162 : vector<8x8xf32>
    %164 = vector.broadcast %143 : vector<8x1xf32> to vector<8x8xf32>
    %165 = arith.addf %163, %164 : vector<8x8xf32>
    %166 = arith.negf %165 : vector<8x8xf32>
    %167 = math.exp %166 : vector<8x8xf32>
    %cst_72 = arith.constant 1.000000e+00 : f32
    %168 = vector.broadcast %cst_72 : f32 to vector<8x8xf32>
    %169 = arith.addf %168, %167 : vector<8x8xf32>
    %170 = arith.divf %168, %169 : vector<8x8xf32>
    %171 = arith.mulf %165, %170 : vector<8x8xf32>
    %c0_73 = arith.constant 0 : index
    %c0_74 = arith.constant 0 : index
    %172 = vector.load %arg21[%c0_73, %c0_74] : memref<8x8xf32, #tpu.memory_space<vmem>>, vector<8x8xf32>
    %cst_75 = arith.constant dense<0.000000e+00> : vector<8x8xf32>
    %173 = tpu.matmul %172, %171, %cst_75 {dimension_numbers = #tpu.dot_dimension_numbers<[1], [0], [0], [1], [0, 0, 1, 1], [], []>} : vector<8x8xf32>, vector<8x8xf32>, vector<8x8xf32> -> vector<8x8xf32>
    %174 = vector.extract_strided_slice %34 {offsets = [64, 0], sizes = [8, 8], strides = [1, 1]} : vector<120x8xf32> to vector<8x8xf32>
    %175 = arith.addf %173, %174 : vector<8x8xf32>
    %c0_76 = arith.constant 0 : index
    %c0_77 = arith.constant 0 : index
    %176 = vector.load %arg22[%c0_76, %c0_77] : memref<8x1xf32, #tpu.memory_space<vmem>>, vector<8x1xf32>
    %c0_78 = arith.constant 0 : index
    %c0_79 = arith.constant 0 : index
    %177 = vector.load %arg23[%c0_78, %c0_79] : memref<8x1xf32, #tpu.memory_space<vmem>>, vector<8x1xf32>
    %cst_80 = arith.constant dense<0.000000e+00> : vector<8xf32>
    %178 = vector.multi_reduction <add>, %175, %cst_80 [0] : vector<8x8xf32> to vector<8xf32>
    %179 = vector.shape_cast %178 : vector<8xf32> to vector<1x8xf32>
    %cst_81 = arith.constant 8.000000e+00 : f32
    %180 = vector.broadcast %cst_81 : f32 to vector<1x8xf32>
    %181 = arith.divf %179, %180 : vector<1x8xf32>
    %182 = vector.broadcast %181 : vector<1x8xf32> to vector<8x8xf32>
    %183 = arith.subf %175, %182 : vector<8x8xf32>
    %184 = arith.mulf %183, %183 : vector<8x8xf32>
    %cst_82 = arith.constant dense<0.000000e+00> : vector<8xf32>
    %185 = vector.multi_reduction <add>, %184, %cst_82 [0] : vector<8x8xf32> to vector<8xf32>
    %186 = vector.shape_cast %185 : vector<8xf32> to vector<1x8xf32>
    %cst_83 = arith.constant 8.000000e+00 : f32
    %187 = vector.broadcast %cst_83 : f32 to vector<1x8xf32>
    %188 = arith.divf %186, %187 : vector<1x8xf32>
    %189 = vector.broadcast %181 : vector<1x8xf32> to vector<8x8xf32>
    %190 = arith.subf %175, %189 : vector<8x8xf32>
    %cst_84 = arith.constant 9.99999974E-6 : f32
    %191 = vector.broadcast %cst_84 : f32 to vector<1x8xf32>
    %192 = arith.addf %188, %191 : vector<1x8xf32>
    %193 = math.rsqrt %192 : vector<1x8xf32>
    %194 = vector.broadcast %193 : vector<1x8xf32> to vector<8x8xf32>
    %195 = arith.mulf %190, %194 : vector<8x8xf32>
    %196 = vector.broadcast %176 : vector<8x1xf32> to vector<8x8xf32>
    %197 = arith.mulf %195, %196 : vector<8x8xf32>
    %198 = vector.broadcast %177 : vector<8x1xf32> to vector<8x8xf32>
    %199 = arith.addf %197, %198 : vector<8x8xf32>
    %200 = arith.negf %199 : vector<8x8xf32>
    %201 = math.exp %200 : vector<8x8xf32>
    %cst_85 = arith.constant 1.000000e+00 : f32
    %202 = vector.broadcast %cst_85 : f32 to vector<8x8xf32>
    %203 = arith.addf %202, %201 : vector<8x8xf32>
    %204 = arith.divf %202, %203 : vector<8x8xf32>
    %205 = arith.mulf %199, %204 : vector<8x8xf32>
    %206 = arith.addf %205, %137 : vector<8x8xf32>
    %c0_86 = arith.constant 0 : index
    %c0_87 = arith.constant 0 : index
    %207 = vector.load %arg24[%c0_86, %c0_87] : memref<16x8xf32, #tpu.memory_space<vmem>>, vector<16x8xf32>
    %cst_88 = arith.constant dense<0.000000e+00> : vector<16x8xf32>
    %208 = tpu.matmul %207, %206, %cst_88 {dimension_numbers = #tpu.dot_dimension_numbers<[1], [0], [0], [1], [0, 0, 1, 1], [], []>} : vector<16x8xf32>, vector<8x8xf32>, vector<16x8xf32> -> vector<16x8xf32>
    %209 = vector.extract_strided_slice %34 {offsets = [72, 0], sizes = [16, 8], strides = [1, 1]} : vector<120x8xf32> to vector<16x8xf32>
    %210 = arith.addf %208, %209 : vector<16x8xf32>
    %c0_89 = arith.constant 0 : index
    %c0_90 = arith.constant 0 : index
    %211 = vector.load %arg25[%c0_89, %c0_90] : memref<16x1xf32, #tpu.memory_space<vmem>>, vector<16x1xf32>
    %c0_91 = arith.constant 0 : index
    %c0_92 = arith.constant 0 : index
    %212 = vector.load %arg26[%c0_91, %c0_92] : memref<16x1xf32, #tpu.memory_space<vmem>>, vector<16x1xf32>
    %cst_93 = arith.constant dense<0.000000e+00> : vector<8xf32>
    %213 = vector.multi_reduction <add>, %210, %cst_93 [0] : vector<16x8xf32> to vector<8xf32>
    %214 = vector.shape_cast %213 : vector<8xf32> to vector<1x8xf32>
    %cst_94 = arith.constant 1.600000e+01 : f32
    %215 = vector.broadcast %cst_94 : f32 to vector<1x8xf32>
    %216 = arith.divf %214, %215 : vector<1x8xf32>
    %217 = vector.broadcast %216 : vector<1x8xf32> to vector<16x8xf32>
    %218 = arith.subf %210, %217 : vector<16x8xf32>
    %219 = arith.mulf %218, %218 : vector<16x8xf32>
    %cst_95 = arith.constant dense<0.000000e+00> : vector<8xf32>
    %220 = vector.multi_reduction <add>, %219, %cst_95 [0] : vector<16x8xf32> to vector<8xf32>
    %221 = vector.shape_cast %220 : vector<8xf32> to vector<1x8xf32>
    %cst_96 = arith.constant 1.600000e+01 : f32
    %222 = vector.broadcast %cst_96 : f32 to vector<1x8xf32>
    %223 = arith.divf %221, %222 : vector<1x8xf32>
    %224 = vector.broadcast %216 : vector<1x8xf32> to vector<16x8xf32>
    %225 = arith.subf %210, %224 : vector<16x8xf32>
    %cst_97 = arith.constant 9.99999974E-6 : f32
    %226 = vector.broadcast %cst_97 : f32 to vector<1x8xf32>
    %227 = arith.addf %223, %226 : vector<1x8xf32>
    %228 = math.rsqrt %227 : vector<1x8xf32>
    %229 = vector.broadcast %228 : vector<1x8xf32> to vector<16x8xf32>
    %230 = arith.mulf %225, %229 : vector<16x8xf32>
    %231 = vector.broadcast %211 : vector<16x1xf32> to vector<16x8xf32>
    %232 = arith.mulf %230, %231 : vector<16x8xf32>
    %233 = vector.broadcast %212 : vector<16x1xf32> to vector<16x8xf32>
    %234 = arith.addf %232, %233 : vector<16x8xf32>
    %235 = arith.negf %234 : vector<16x8xf32>
    %236 = math.exp %235 : vector<16x8xf32>
    %cst_98 = arith.constant 1.000000e+00 : f32
    %237 = vector.broadcast %cst_98 : f32 to vector<16x8xf32>
    %238 = arith.addf %237, %236 : vector<16x8xf32>
    %239 = arith.divf %237, %238 : vector<16x8xf32>
    %240 = arith.mulf %234, %239 : vector<16x8xf32>
    %241 = arith.addf %240, %103 : vector<16x8xf32>
    %c0_99 = arith.constant 0 : index
    %c0_100 = arith.constant 0 : index
    %242 = vector.load %arg27[%c0_99, %c0_100] : memref<32x16xf32, #tpu.memory_space<vmem>>, vector<32x16xf32>
    %cst_101 = arith.constant dense<0.000000e+00> : vector<32x8xf32>
    %243 = tpu.matmul %242, %241, %cst_101 {dimension_numbers = #tpu.dot_dimension_numbers<[1], [0], [0], [1], [0, 0, 1, 1], [], []>} : vector<32x16xf32>, vector<16x8xf32>, vector<32x8xf32> -> vector<32x8xf32>
    %244 = vector.extract_strided_slice %34 {offsets = [88, 0], sizes = [32, 8], strides = [1, 1]} : vector<120x8xf32> to vector<32x8xf32>
    %245 = arith.addf %243, %244 : vector<32x8xf32>
    %c0_102 = arith.constant 0 : index
    %c0_103 = arith.constant 0 : index
    %246 = vector.load %arg28[%c0_102, %c0_103] : memref<32x1xf32, #tpu.memory_space<vmem>>, vector<32x1xf32>
    %c0_104 = arith.constant 0 : index
    %c0_105 = arith.constant 0 : index
    %247 = vector.load %arg29[%c0_104, %c0_105] : memref<32x1xf32, #tpu.memory_space<vmem>>, vector<32x1xf32>
    %cst_106 = arith.constant dense<0.000000e+00> : vector<8xf32>
    %248 = vector.multi_reduction <add>, %245, %cst_106 [0] : vector<32x8xf32> to vector<8xf32>
    %249 = vector.shape_cast %248 : vector<8xf32> to vector<1x8xf32>
    %cst_107 = arith.constant 3.200000e+01 : f32
    %250 = vector.broadcast %cst_107 : f32 to vector<1x8xf32>
    %251 = arith.divf %249, %250 : vector<1x8xf32>
    %252 = vector.broadcast %251 : vector<1x8xf32> to vector<32x8xf32>
    %253 = arith.subf %245, %252 : vector<32x8xf32>
    %254 = arith.mulf %253, %253 : vector<32x8xf32>
    %cst_108 = arith.constant dense<0.000000e+00> : vector<8xf32>
    %255 = vector.multi_reduction <add>, %254, %cst_108 [0] : vector<32x8xf32> to vector<8xf32>
    %256 = vector.shape_cast %255 : vector<8xf32> to vector<1x8xf32>
    %cst_109 = arith.constant 3.200000e+01 : f32
    %257 = vector.broadcast %cst_109 : f32 to vector<1x8xf32>
    %258 = arith.divf %256, %257 : vector<1x8xf32>
    %259 = vector.broadcast %251 : vector<1x8xf32> to vector<32x8xf32>
    %260 = arith.subf %245, %259 : vector<32x8xf32>
    %cst_110 = arith.constant 9.99999974E-6 : f32
    %261 = vector.broadcast %cst_110 : f32 to vector<1x8xf32>
    %262 = arith.addf %258, %261 : vector<1x8xf32>
    %263 = math.rsqrt %262 : vector<1x8xf32>
    %264 = vector.broadcast %263 : vector<1x8xf32> to vector<32x8xf32>
    %265 = arith.mulf %260, %264 : vector<32x8xf32>
    %266 = vector.broadcast %246 : vector<32x1xf32> to vector<32x8xf32>
    %267 = arith.mulf %265, %266 : vector<32x8xf32>
    %268 = vector.broadcast %247 : vector<32x1xf32> to vector<32x8xf32>
    %269 = arith.addf %267, %268 : vector<32x8xf32>
    %270 = arith.negf %269 : vector<32x8xf32>
    %271 = math.exp %270 : vector<32x8xf32>
    %cst_111 = arith.constant 1.000000e+00 : f32
    %272 = vector.broadcast %cst_111 : f32 to vector<32x8xf32>
    %273 = arith.addf %272, %271 : vector<32x8xf32>
    %274 = arith.divf %272, %273 : vector<32x8xf32>
    %275 = arith.mulf %269, %274 : vector<32x8xf32>
    %276 = arith.addf %275, %69 : vector<32x8xf32>
    %c0_112 = arith.constant 0 : index
    %c0_113 = arith.constant 0 : index
    %277 = vector.load %arg30[%c0_112, %c0_113] : memref<32x32xf32, #tpu.memory_space<vmem>>, vector<32x32xf32>
    %cst_114 = arith.constant dense<0.000000e+00> : vector<32x8xf32>
    %278 = tpu.matmul %277, %276, %cst_114 {dimension_numbers = #tpu.dot_dimension_numbers<[1], [0], [0], [1], [0, 0, 1, 1], [], []>} : vector<32x32xf32>, vector<32x8xf32>, vector<32x8xf32> -> vector<32x8xf32>
    %c0_115 = arith.constant 0 : index
    %c0_116 = arith.constant 0 : index
    %279 = vector.load %arg31[%c0_115, %c0_116] : memref<32x1xf32, #tpu.memory_space<vmem>>, vector<32x1xf32>
    %280 = vector.broadcast %279 : vector<32x1xf32> to vector<32x8xf32>
    %281 = arith.addf %278, %280 : vector<32x8xf32>
    %c0_117 = arith.constant 0 : index
    %c0_118 = arith.constant 0 : index
    %282 = vector.load %arg32[%c0_117, %c0_118] : memref<32x1xf32, #tpu.memory_space<vmem>>, vector<32x1xf32>
    %c0_119 = arith.constant 0 : index
    %c0_120 = arith.constant 0 : index
    %283 = vector.load %arg33[%c0_119, %c0_120] : memref<32x1xf32, #tpu.memory_space<vmem>>, vector<32x1xf32>
    %cst_121 = arith.constant dense<0.000000e+00> : vector<8xf32>
    %284 = vector.multi_reduction <add>, %281, %cst_121 [0] : vector<32x8xf32> to vector<8xf32>
    %285 = vector.shape_cast %284 : vector<8xf32> to vector<1x8xf32>
    %cst_122 = arith.constant 3.200000e+01 : f32
    %286 = vector.broadcast %cst_122 : f32 to vector<1x8xf32>
    %287 = arith.divf %285, %286 : vector<1x8xf32>
    %288 = vector.broadcast %287 : vector<1x8xf32> to vector<32x8xf32>
    %289 = arith.subf %281, %288 : vector<32x8xf32>
    %290 = arith.mulf %289, %289 : vector<32x8xf32>
    %cst_123 = arith.constant dense<0.000000e+00> : vector<8xf32>
    %291 = vector.multi_reduction <add>, %290, %cst_123 [0] : vector<32x8xf32> to vector<8xf32>
    %292 = vector.shape_cast %291 : vector<8xf32> to vector<1x8xf32>
    %cst_124 = arith.constant 3.200000e+01 : f32
    %293 = vector.broadcast %cst_124 : f32 to vector<1x8xf32>
    %294 = arith.divf %292, %293 : vector<1x8xf32>
    %295 = vector.broadcast %287 : vector<1x8xf32> to vector<32x8xf32>
    %296 = arith.subf %281, %295 : vector<32x8xf32>
    %cst_125 = arith.constant 9.99999974E-6 : f32
    %297 = vector.broadcast %cst_125 : f32 to vector<1x8xf32>
    %298 = arith.addf %294, %297 : vector<1x8xf32>
    %299 = math.rsqrt %298 : vector<1x8xf32>
    %300 = vector.broadcast %299 : vector<1x8xf32> to vector<32x8xf32>
    %301 = arith.mulf %296, %300 : vector<32x8xf32>
    %302 = vector.broadcast %282 : vector<32x1xf32> to vector<32x8xf32>
    %303 = arith.mulf %301, %302 : vector<32x8xf32>
    %304 = vector.broadcast %283 : vector<32x1xf32> to vector<32x8xf32>
    %305 = arith.addf %303, %304 : vector<32x8xf32>
    %306 = arith.negf %305 : vector<32x8xf32>
    %307 = math.exp %306 : vector<32x8xf32>
    %cst_126 = arith.constant 1.000000e+00 : f32
    %308 = vector.broadcast %cst_126 : f32 to vector<32x8xf32>
    %309 = arith.addf %308, %307 : vector<32x8xf32>
    %310 = arith.divf %308, %309 : vector<32x8xf32>
    %311 = arith.mulf %305, %310 : vector<32x8xf32>
    %c0_127 = arith.constant 0 : index
    %c0_128 = arith.constant 0 : index
    %312 = vector.load %arg34[%c0_127, %c0_128] : memref<4x32xf32, #tpu.memory_space<vmem>>, vector<4x32xf32>
    %cst_129 = arith.constant dense<0.000000e+00> : vector<4x8xf32>
    %313 = tpu.matmul %312, %311, %cst_129 {dimension_numbers = #tpu.dot_dimension_numbers<[1], [0], [0], [1], [0, 0, 1, 1], [], []>} : vector<4x32xf32>, vector<32x8xf32>, vector<4x8xf32> -> vector<4x8xf32>
    %c0_130 = arith.constant 0 : index
    %c0_131 = arith.constant 0 : index
    %314 = vector.load %arg35[%c0_130, %c0_131] : memref<4x1xf32, #tpu.memory_space<vmem>>, vector<4x1xf32>
    %315 = vector.broadcast %314 : vector<4x1xf32> to vector<4x8xf32>
    %316 = arith.addf %313, %315 : vector<4x8xf32>
    %c0_132 = arith.constant 0 : index
    %c0_133 = arith.constant 0 : index
    %317 = vector.load %arg36[%c0_132, %c0_133] : memref<4x8xf32, #tpu.memory_space<vmem>>, vector<4x8xf32>
    tpu.vector_store %arg36[%c0_132, %c0_133], %316 {strides = array<i32>} : memref<4x8xf32, #tpu.memory_space<vmem>>, vector<4x8xf32>,
    return
  }
}

</mosaic_0001>

<llo_original>
// kernel: tpu_custom_call.1
$region0: #{tpu_custom_call.1}
  #allocation0 [shape = 'u32[]', space=smem, size = 0x4, offset = 0x4, fixed_abs, tag = 'smem constant byte address 0x4 - core index']
  #allocation1 [shape = 'u32[72,128]{1,0:T(1,128)}', space=vmem, size = 0x9000, scoped, tag = 'internal scratch']
  %s0 = inlined_call_operand.smem [shape: u32[37], index: -1, kind: input, shape index: {}]
  %s1 = sld [smem:[%s0]]
  %s2 = scalar_lea.smem %s0, 1
  %s3 = sld [smem:[%s2]]
  %s4 = scalar_lea.smem %s0, 2
  %s5 = sld [smem:[%s4]]
  %s6 = scalar_lea.smem %s0, 3
  %s7 = sld [smem:[%s6]]
  %s8 = scalar_lea.smem %s0, 4
  %s9 = sld [smem:[%s8]]
  %s10 = scalar_lea.smem %s0, 5
  %s11 = sld [smem:[%s10]]
  %s12 = scalar_lea.smem %s0, 6
  %s13 = sld [smem:[%s12]]
  %s14 = scalar_lea.smem %s0, 7
  %s15 = sld [smem:[%s14]]
  %s16 = scalar_lea.smem %s0, 8
  %s17 = sld [smem:[%s16]]
  %s18 = scalar_lea.smem %s0, 9
  %s19 = sld [smem:[%s18]]
  %s20 = scalar_lea.smem %s0, 10
  %s21 = sld [smem:[%s20]]
  %s22 = scalar_lea.smem %s0, 11
  %s23 = sld [smem:[%s22]]
  %s24 = scalar_lea.smem %s0, 12
  %s25 = sld [smem:[%s24]]
  %s26 = scalar_lea.smem %s0, 13
  %s27 = sld [smem:[%s26]]
  %s28 = scalar_lea.smem %s0, 14
  %s29 = sld [smem:[%s28]]
  %s30 = scalar_lea.smem %s0, 15
  %s31 = sld [smem:[%s30]]
  %s32 = scalar_lea.smem %s0, 16
  %s33 = sld [smem:[%s32]]
  %s34 = scalar_lea.smem %s0, 17
  %s35 = sld [smem:[%s34]]
  %s36 = scalar_lea.smem %s0, 18
  %s37 = sld [smem:[%s36]]
  %s38 = scalar_lea.smem %s0, 19
  %s39 = sld [smem:[%s38]]
  %s40 = scalar_lea.smem %s0, 20
  %s41 = sld [smem:[%s40]]
  %s42 = scalar_lea.smem %s0, 21
  %s43 = sld [smem:[%s42]]
  %s44 = scalar_lea.smem %s0, 22
  %s45 = sld [smem:[%s44]]
  %s46 = scalar_lea.smem %s0, 23
  %s47 = sld [smem:[%s46]]
  %s48 = scalar_lea.smem %s0, 24
  %s49 = sld [smem:[%s48]]
  %s50 = scalar_lea.smem %s0, 25
  %s51 = sld [smem:[%s50]]
  %s52 = scalar_lea.smem %s0, 26
  %s53 = sld [smem:[%s52]]
  %s54 = scalar_lea.smem %s0, 27
  %s55 = sld [smem:[%s54]]
  %s56 = scalar_lea.smem %s0, 28
  %s57 = sld [smem:[%s56]]
  %s58 = scalar_lea.smem %s0, 29
  %s59 = sld [smem:[%s58]]
  %s60 = scalar_lea.smem %s0, 30
  %s61 = sld [smem:[%s60]]
  %s62 = scalar_lea.smem %s0, 31
  %s63 = sld [smem:[%s62]]
  %s64 = scalar_lea.smem %s0, 32
  %s65 = sld [smem:[%s64]]
  %s66 = scalar_lea.smem %s0, 33
  %s67 = sld [smem:[%s66]]
  %s68 = scalar_lea.smem %s0, 34
  %s69 = sld [smem:[%s68]]
  %s70 = scalar_lea.smem %s0, 35
  %s71 = sld [smem:[%s70]]
  %s72 = scalar_lea.smem %s0, 36
  %s73 = sld [smem:[%s72]]
  %s74 = sld [smem:[#allocation0]]
  $region154: #{tpu_custom_call.1} parent=0
    _
  %s76 = ssub.s32 1, %s74
  %s77 = scalar_select 0, %s76, %s74
  $region1: #{tpu_custom_call.1} parent=0
    #allocation2 [shape = 'u8[2048]{0}', space=vmem, size = 0x800, scoped, tag = 'output window, operand 0, single buffered']
    #allocation3 [shape = 's32[1]{0}', space=sflag, size = 0x4, scoped, tag = 'scoped memory for tpu_custom_call.1']
    %78 = vsyncpa [#allocation3], 0
    // Predicated region
    $region2: #{tpu_custom_call.1} parent=1 // pred_check
      _
    $region3: #{tpu_custom_call.1} parent=1 // pred_check_branch
      %80 = sbr.rel (0) target = $region5
    $region4: #{tpu_custom_call.1} parent=1 // pred_region
      _
    $region5: #{tpu_custom_call.1} parent=1 // pred_fallthru
      _
    // Predicated region
    $region6: #{tpu_custom_call.1} parent=1 // pred_check
      _
    $region7: #{tpu_custom_call.1} parent=1 // pred_check_branch
      %82 = sbr.rel (0) target = $region9
    $region8: #{tpu_custom_call.1} parent=1 // pred_region
      _
    $region9: #{tpu_custom_call.1} parent=1 // pred_fallthru
      _
    // Predicated region
    $region10: #{tpu_custom_call.1} parent=1 // pred_check
      _
    $region11: #{tpu_custom_call.1} parent=1 // pred_check_branch
      %84 = sbr.rel (0) target = $region13
    $region12: #{tpu_custom_call.1} parent=1 // pred_region
      _
    $region13: #{tpu_custom_call.1} parent=1 // pred_fallthru
      _
    // Predicated region
    $region14: #{tpu_custom_call.1} parent=1 // pred_check
      _
    $region15: #{tpu_custom_call.1} parent=1 // pred_check_branch
      %86 = sbr.rel (0) target = $region17
    $region16: #{tpu_custom_call.1} parent=1 // pred_region
      _
    $region17: #{tpu_custom_call.1} parent=1 // pred_fallthru
      _
    // Predicated region
    $region18: #{tpu_custom_call.1} parent=1 // pred_check
      _
    $region19: #{tpu_custom_call.1} parent=1 // pred_check_branch
      %88 = sbr.rel (0) target = $region21
    $region20: #{tpu_custom_call.1} parent=1 // pred_region
      _
    $region21: #{tpu_custom_call.1} parent=1 // pred_fallthru
      _
    // Predicated region
    $region22: #{tpu_custom_call.1} parent=1 // pred_check
      _
    $region23: #{tpu_custom_call.1} parent=1 // pred_check_branch
      %90 = sbr.rel (0) target = $region25
    $region24: #{tpu_custom_call.1} parent=1 // pred_region
      _
    $region25: #{tpu_custom_call.1} parent=1 // pred_fallthru
      _
    // Predicated region
    $region26: #{tpu_custom_call.1} parent=1 // pred_check
      _
    $region27: #{tpu_custom_call.1} parent=1 // pred_check_branch
      %92 = sbr.rel (0) target = $region29
    $region28: #{tpu_custom_call.1} parent=1 // pred_region
      _
    $region29: #{tpu_custom_call.1} parent=1 // pred_fallthru
      _
    // Predicated region
    $region30: #{tpu_custom_call.1} parent=1 // pred_check
      _
    $region31: #{tpu_custom_call.1} parent=1 // pred_check_branch
      %94 = sbr.rel (0) target = $region33
    $region32: #{tpu_custom_call.1} parent=1 // pred_region
      _
    $region33: #{tpu_custom_call.1} parent=1 // pred_fallthru
      _
    // Predicated region
    $region34: #{tpu_custom_call.1} parent=1 // pred_check
      _
    $region35: #{tpu_custom_call.1} parent=1 // pred_check_branch
      %96 = sbr.rel (0) target = $region37
    $region36: #{tpu_custom_call.1} parent=1 // pred_region
      _
    $region37: #{tpu_custom_call.1} parent=1 // pred_fallthru
      _
    // Predicated region
    $region38: #{tpu_custom_call.1} parent=1 // pred_check
      _
    $region39: #{tpu_custom_call.1} parent=1 // pred_check_branch
      %98 = sbr.rel (0) target = $region41
    $region40: #{tpu_custom_call.1} parent=1 // pred_region
      _
    $region41: #{tpu_custom_call.1} parent=1 // pred_fallthru
      _
    // Predicated region
    $region42: #{tpu_custom_call.1} parent=1 // pred_check
      _
    $region43: #{tpu_custom_call.1} parent=1 // pred_check_branch
      %100 = sbr.rel (0) target = $region45
    $region44: #{tpu_custom_call.1} parent=1 // pred_region
      _
    $region45: #{tpu_custom_call.1} parent=1 // pred_fallthru
      _
    // Predicated region
    $region46: #{tpu_custom_call.1} parent=1 // pred_check
      _
    $region47: #{tpu_custom_call.1} parent=1 // pred_check_branch
      %102 = sbr.rel (0) target = $region49
    $region48: #{tpu_custom_call.1} parent=1 // pred_region
      _
    $region49: #{tpu_custom_call.1} parent=1 // pred_fallthru
      _
    // Predicated region
    $region50: #{tpu_custom_call.1} parent=1 // pred_check
      _
    $region51: #{tpu_custom_call.1} parent=1 // pred_check_branch
      %104 = sbr.rel (0) target = $region53
    $region52: #{tpu_custom_call.1} parent=1 // pred_region
      _
    $region53: #{tpu_custom_call.1} parent=1 // pred_fallthru
      _
    // Predicated region
    $region54: #{tpu_custom_call.1} parent=1 // pred_check
      _
    $region55: #{tpu_custom_call.1} parent=1 // pred_check_branch
      %106 = sbr.rel (0) target = $region57
    $region56: #{tpu_custom_call.1} parent=1 // pred_region
      _
    $region57: #{tpu_custom_call.1} parent=1 // pred_fallthru
      _
    // Predicated region
    $region58: #{tpu_custom_call.1} parent=1 // pred_check
      _
    $region59: #{tpu_custom_call.1} parent=1 // pred_check_branch
      %108 = sbr.rel (0) target = $region61
    $region60: #{tpu_custom_call.1} parent=1 // pred_region
      _
    $region61: #{tpu_custom_call.1} parent=1 // pred_fallthru
      _
    // Predicated region
    $region62: #{tpu_custom_call.1} parent=1 // pred_check
      _
    $region63: #{tpu_custom_call.1} parent=1 // pred_check_branch
      %110 = sbr.rel (0) target = $region65
    $region64: #{tpu_custom_call.1} parent=1 // pred_region
      _
    $region65: #{tpu_custom_call.1} parent=1 // pred_fallthru
      _
    // Predicated region
    $region66: #{tpu_custom_call.1} parent=1 // pred_check
      _
    $region67: #{tpu_custom_call.1} parent=1 // pred_check_branch
      %112 = sbr.rel (0) target = $region69
    $region68: #{tpu_custom_call.1} parent=1 // pred_region
      _
    $region69: #{tpu_custom_call.1} parent=1 // pred_fallthru
      _
    // Predicated region
    $region70: #{tpu_custom_call.1} parent=1 // pred_check
      _
    $region71: #{tpu_custom_call.1} parent=1 // pred_check_branch
      %114 = sbr.rel (0) target = $region73
    $region72: #{tpu_custom_call.1} parent=1 // pred_region
      _
    $region73: #{tpu_custom_call.1} parent=1 // pred_fallthru
      _
    // Predicated region
    $region74: #{tpu_custom_call.1} parent=1 // pred_check
      _
    $region75: #{tpu_custom_call.1} parent=1 // pred_check_branch
      %116 = sbr.rel (0) target = $region77
    $region76: #{tpu_custom_call.1} parent=1 // pred_region
      _
    $region77: #{tpu_custom_call.1} parent=1 // pred_fallthru
      _
    // Predicated region
    $region78: #{tpu_custom_call.1} parent=1 // pred_check
      _
    $region79: #{tpu_custom_call.1} parent=1 // pred_check_branch
      %118 = sbr.rel (0) target = $region81
    $region80: #{tpu_custom_call.1} parent=1 // pred_region
      _
    $region81: #{tpu_custom_call.1} parent=1 // pred_fallthru
      _
    // Predicated region
    $region82: #{tpu_custom_call.1} parent=1 // pred_check
      _
    $region83: #{tpu_custom_call.1} parent=1 // pred_check_branch
      %120 = sbr.rel (0) target = $region85
    $region84: #{tpu_custom_call.1} parent=1 // pred_region
      _
    $region85: #{tpu_custom_call.1} parent=1 // pred_fallthru
      _
    // Predicated region
    $region86: #{tpu_custom_call.1} parent=1 // pred_check
      _
    $region87: #{tpu_custom_call.1} parent=1 // pred_check_branch
      %122 = sbr.rel (0) target = $region89
    $region88: #{tpu_custom_call.1} parent=1 // pred_region
      _
    $region89: #{tpu_custom_call.1} parent=1 // pred_fallthru
      _
    // Predicated region
    $region90: #{tpu_custom_call.1} parent=1 // pred_check
      _
    $region91: #{tpu_custom_call.1} parent=1 // pred_check_branch
      %124 = sbr.rel (0) target = $region93
    $region92: #{tpu_custom_call.1} parent=1 // pred_region
      _
    $region93: #{tpu_custom_call.1} parent=1 // pred_fallthru
      _
    // Predicated region
    $region94: #{tpu_custom_call.1} parent=1 // pred_check
      _
    $region95: #{tpu_custom_call.1} parent=1 // pred_check_branch
      %126 = sbr.rel (0) target = $region97
    $region96: #{tpu_custom_call.1} parent=1 // pred_region
      _
    $region97: #{tpu_custom_call.1} parent=1 // pred_fallthru
      _
    // Predicated region
    $region98: #{tpu_custom_call.1} parent=1 // pred_check
      _
    $region99: #{tpu_custom_call.1} parent=1 // pred_check_branch
      %128 = sbr.rel (0) target = $region101
    $region100: #{tpu_custom_call.1} parent=1 // pred_region
      _
    $region101: #{tpu_custom_call.1} parent=1 // pred_fallthru
      _
    // Predicated region
    $region102: #{tpu_custom_call.1} parent=1 // pred_check
      _
    $region103: #{tpu_custom_call.1} parent=1 // pred_check_branch
      %130 = sbr.rel (0) target = $region105
    $region104: #{tpu_custom_call.1} parent=1 // pred_region
      _
    $region105: #{tpu_custom_call.1} parent=1 // pred_fallthru
      _
    // Predicated region
    $region106: #{tpu_custom_call.1} parent=1 // pred_check
      _
    $region107: #{tpu_custom_call.1} parent=1 // pred_check_branch
      %132 = sbr.rel (0) target = $region109
    $region108: #{tpu_custom_call.1} parent=1 // pred_region
      _
    $region109: #{tpu_custom_call.1} parent=1 // pred_fallthru
      _
    // Predicated region
    $region110: #{tpu_custom_call.1} parent=1 // pred_check
      _
    $region111: #{tpu_custom_call.1} parent=1 // pred_check_branch
      %134 = sbr.rel (0) target = $region113
    $region112: #{tpu_custom_call.1} parent=1 // pred_region
      _
    $region113: #{tpu_custom_call.1} parent=1 // pred_fallthru
      _
    // Predicated region
    $region114: #{tpu_custom_call.1} parent=1 // pred_check
      _
    $region115: #{tpu_custom_call.1} parent=1 // pred_check_branch
      %136 = sbr.rel (0) target = $region117
    $region116: #{tpu_custom_call.1} parent=1 // pred_region
      _
    $region117: #{tpu_custom_call.1} parent=1 // pred_fallthru
      _
    // Predicated region
    $region118: #{tpu_custom_call.1} parent=1 // pred_check
      _
    $region119: #{tpu_custom_call.1} parent=1 // pred_check_branch
      %138 = sbr.rel (0) target = $region121
    $region120: #{tpu_custom_call.1} parent=1 // pred_region
      _
    $region121: #{tpu_custom_call.1} parent=1 // pred_fallthru
      _
    // Predicated region
    $region122: #{tpu_custom_call.1} parent=1 // pred_check
      _
    $region123: #{tpu_custom_call.1} parent=1 // pred_check_branch
      %140 = sbr.rel (0) target = $region125
    $region124: #{tpu_custom_call.1} parent=1 // pred_region
      _
    $region125: #{tpu_custom_call.1} parent=1 // pred_fallthru
      _
    // Predicated region
    $region126: #{tpu_custom_call.1} parent=1 // pred_check
      _
    $region127: #{tpu_custom_call.1} parent=1 // pred_check_branch
      %142 = sbr.rel (0) target = $region129
    $region128: #{tpu_custom_call.1} parent=1 // pred_region
      _
    $region129: #{tpu_custom_call.1} parent=1 // pred_fallthru
      _
    // Predicated region
    $region130: #{tpu_custom_call.1} parent=1 // pred_check
      _
    $region131: #{tpu_custom_call.1} parent=1 // pred_check_branch
      %144 = sbr.rel (0) target = $region133
    $region132: #{tpu_custom_call.1} parent=1 // pred_region
      _
    $region133: #{tpu_custom_call.1} parent=1 // pred_fallthru
      _
    // Predicated region
    $region134: #{tpu_custom_call.1} parent=1 // pred_check
      _
    $region135: #{tpu_custom_call.1} parent=1 // pred_check_branch
      %146 = sbr.rel (0) target = $region137
    $region136: #{tpu_custom_call.1} parent=1 // pred_region
      _
    $region137: #{tpu_custom_call.1} parent=1 // pred_fallthru
      _
    // Predicated region
    $region138: #{tpu_custom_call.1} parent=1 // pred_check
      _
    $region139: #{tpu_custom_call.1} parent=1 // pred_check_branch
      %148 = sbr.rel (0) target = $region141
    $region140: #{tpu_custom_call.1} parent=1 // pred_region
      _
    $region141: #{tpu_custom_call.1} parent=1 // pred_fallthru
      _
    // Predicated region
    $region142: #{tpu_custom_call.1} parent=1 // pred_check
      _
    $region143: #{tpu_custom_call.1} parent=1 // pred_check_branch
      %150 = sbr.rel (0) target = $region145
    $region144: #{tpu_custom_call.1} parent=1 // pred_region
      _
    $region145: #{tpu_custom_call.1} parent=1 // pred_fallthru
      _
    %v151 = vld [vmem:[%s5] sm:$0xff]
    %v152 = vld [vmem:[%s5 + $0x8] sm:$0xff]
    %v153 = vld [vmem:[%s3] sm:$0x1]
    %155 = vset.pattern.permute.xlu0 0
    %156 = vperm.xlu0 %155, %v151
    %v157 = vpop.permute.xlu0 %156
    %160 = vset.pattern.permute.xlu0 0
    %161 = vperm.xlu0 %160, %v152
    %v162 = vpop.permute.xlu0 %161
    %v165 = vperm.slane %v153, 0
    %v167 = vmul.f32 %v157, %v165
    %v168 = vmul.f32 %v162, %v165
    %v169 = vand.u32 2147483647, %v167
    %vm170 = vcmp.le.f32.partialorder %v169, 0.7853982
    %vm171 = vcmp.lt.s32.totalorder %v167, 0
    %v172 = vand.u32 %v167, 2139095040
    %v173 = vshrl.u32 %v172, 23
    %v174 = vsub.s32 %v173, 127
    %v175 = vand.u32 2147483647, %v167
    %v176 = vand.u32 %v175, 8388607
    %v177 = vor.u32 %v176, 8388608
    %v178 = vsub.s32 0, %v177
    %v179 = vadd.s32 %v174, 1
    %vm180 = vcmp.gt.s32.totalorder %v179, 0
    %v181 = vsel %vm180, %v179, 0
    %v182 = vshrl.u32 %v181, 5
    %v183 = vand.u32 %v181, 31
    %v184 = vsub.s32 32, %v183
    %v185 = vshrl.u32 683565275, %v184
    %v186 = vshll.u32 683565275, %v183
    %v187 = vshrl.u32 2475754826, %v184
    %v188 = vor.u32 %v186, %v187
    %v189 = vshll.u32 2475754826, %v183
    %v190 = vshrl.u32 2131351028, %v184
    %v191 = vor.u32 %v189, %v190
    %v192 = vshll.u32 2131351028, %v183
    %v193 = vshrl.u32 2102212464, %v184
    %v194 = vor.u32 %v192, %v193
    %v195 = vshll.u32 2102212464, %v183
    %v196 = vshrl.u32 920167782, %v184
    %v197 = vor.u32 %v195, %v196
    %v198 = vshll.u32 920167782, %v183
    %v199 = vshrl.u32 1326507024, %v184
    %v200 = vor.u32 %v198, %v199
    %vm201 = vcmp.lt.s32.totalorder %v182, 1
    %vm202 = vcmp.lt.s32.totalorder %v182, 2
    %vm203 = vcmp.lt.s32.totalorder %v182, 3
    %vm204 = vcmp.lt.s32.totalorder %v182, 4
    %v205 = vsel %vm201, %v185, %v188
    %v206 = vsel %vm204, %v194, 2102212464
    %v207 = vsel %vm203, %v191, %v206
    %v208 = vsel %vm202, %v205, %v207
    %v209 = vsel %vm201, %v188, %v191
    %v210 = vsel %vm204, %v197, 920167782
    %v211 = vsel %vm203, %v194, %v210
    %v212 = vsel %vm202, %v209, %v211
    %v213 = vsel %vm201, %v191, %v194
    %v214 = vsel %vm204, %v200, 1326507024
    %v215 = vsel %vm203, %v197, %v214
    %v216 = vsel %vm202, %v213, %v215
    %v217 = vshll.u32 %v177, 8
    %v218 = vand.u32 %v217, 65535
    %v219 = vshrl.u32 %v217, 16
    %v220 = vand.u32 %v216, 65535
    %v221 = vshrl.u32 %v216, 16
    %v222 = vmul.u32 %v218, %v220
    %v223 = vmul.u32 %v218, %v221
    %v224 = vmul.u32 %v219, %v220
    %v225 = vmul.u32 %v219, %v221
    %v226 = vshll.u32 %v223, 16
    %v227 = vshrl.u32 %v223, 16
    %v228 = vshll.u32 %v224, 16
    %v229 = vshrl.u32 %v224, 16
    %vm230 = vc.u32 %v222, %v226
    %v231 = vsel %vm230, 1, 0
    %v232 = vadd.s32 %v222, %v226
    %v233 = vadd.s32 %v225, %v231
    %vm234 = vc.u32 %v232, %v228
    %v235 = vsel %vm234, 1, 0
    %v236 = vadd.s32 %v232, %v228
    %v237 = vadd.s32 %v233, %v235
    %v238 = vadd.s32 %v237, %v227
    %v239 = vadd.s32 %v238, %v229
    %v240 = vand.u32 %v217, 65535
    %v241 = vshrl.u32 %v217, 16
    %v242 = vand.u32 %v212, 65535
    %v243 = vshrl.u32 %v212, 16
    %v244 = vmul.u32 %v240, %v242
    %v245 = vmul.u32 %v240, %v243
    %v246 = vmul.u32 %v241, %v242
    %v247 = vmul.u32 %v241, %v243
    %v248 = vshll.u32 %v245, 16
    %v249 = vshrl.u32 %v245, 16
    %v250 = vshll.u32 %v246, 16
    %v251 = vshrl.u32 %v246, 16
    %vm252 = vc.u32 %v244, %v248
    %v253 = vsel %vm252, 1, 0
    %v254 = vadd.s32 %v244, %v248
    %v255 = vadd.s32 %v247, %v253
    %vm256 = vc.u32 %v254, %v250
    %v257 = vsel %vm256, 1, 0
    %v258 = vadd.s32 %v254, %v250
    %v259 = vadd.s32 %v255, %v257
    %v260 = vadd.s32 %v259, %v249
    %v261 = vadd.s32 %v260, %v251
    %v262 = vmul.u32 %v217, %v208
    %v263 = vadd.s32 %v239, %v258
    %vm264 = vc.u32 %v239, %v258
    %v265 = vadd.s32 %v261, 1
    %v266 = vsel %vm264, %v265, %v261
    %v267 = vadd.s32 %v262, %v266
    %v268 = vadd.s32 %v267, 536870912
    %v269 = vshrl.u32 %v268, 30
    %v270 = vshll.u32 %v269, 30
    %v271 = vsub.s32 %v267, %v270
    %vm272 = vcmp.lt.s32.totalorder %v271, 0
    %v273 = vsub.s32 0, %v271
    %v274 = vsel %vm272, %v273, %v271
    %v275 = vclz %v274
    %v276 = vsub.s32 %v275, 2
    %vm277 = vcmp.gt.s32.totalorder 0, %v276
    %v278 = vsel %vm277, 0, %v276
    %v279 = vsub.s32 32, %v278
    %v280 = vshll.u32 %v271, %v278
    %v281 = vshrl.u32 %v263, %v279
    %v282 = vor.u32 %v280, %v281
    %v283 = vsub.s32 4294967266, %v278
    %v284 = vadd.s32 %v283, 127
    %v285 = vshll.u32 %v284, 23
    %v286 = vor.u32 4788187, %v285
    %v287 = vand.u32 2147483647, %v286
    %v289 = vcvt.s32.f32 %v282
    %v290 = vmul.f32 %v289, %v287
    %v291 = vxor.u32 %v290, 2147483648
    %v292 = vsel %vm171, %v291, %v290
    %v293 = vsub.s32 4, %v269
    %v294 = vsel %vm171, %v293, %v269
    %v295 = vsel %vm170, %v167, %v292
    %v296 = vsel %vm170, 0, %v294
    %v297 = vmul.f32 %v295, %v295
    %v298 = vmul.f32 %v297, -0.001358992
    %v299 = vadd.f32 %v298, 0.041655596
    %v300 = vmul.f32 %v297, %v299
    %v301 = vadd.f32 %v300, -0.4999988
    %v302 = vmul.f32 %v297, %v301
    %v303 = vadd.f32 1.0, %v302
    %v304 = vmul.f32 %v295, %v295
    %v305 = vmul.f32 %v304, -0.00019511016
    %v306 = vadd.f32 %v305, 0.008332121
    %v307 = vmul.f32 %v304, %v306
    %v308 = vadd.f32 %v307, -0.16666654
    %v309 = vmul.f32 %v304, %v308
    %v310 = vadd.f32 %v309, 1.0
    %v311 = vmul.f32 %v310, %v295
    %vm312 = vweird.f32 %v167
    %v313 = vand.u32 %v296, 3
    %vm314 = vcmp.lt.s32.totalorder %v313, 2
    %vm315 = vcmp.eq.s32.totalorder %v313, 0
    %v316 = vxor.u32 %v311, 2147483648
    %v317 = vsel %vm315, %v303, %v316
    %vm318 = vcmp.eq.s32.totalorder %v313, 2
    %v319 = vxor.u32 %v303, 2147483648
    %v320 = vsel %vm318, %v319, %v311
    %v321 = vsel %vm314, %v317, %v320
    %v322 = vsel %vm312, nan, %v321
    %v323 = vand.u32 2147483647, %v168
    %vm324 = vcmp.le.f32.partialorder %v323, 0.7853982
    %vm325 = vcmp.lt.s32.totalorder %v168, 0
    %v326 = vand.u32 %v168, 2139095040
    %v327 = vshrl.u32 %v326, 23
    %v328 = vsub.s32 %v327, 127
    %v329 = vand.u32 2147483647, %v168
    %v330 = vand.u32 %v329, 8388607
    %v331 = vor.u32 %v330, 8388608
    %v332 = vsub.s32 0, %v331
    %v333 = vadd.s32 %v328, 1
    %vm334 = vcmp.gt.s32.totalorder %v333, 0
    %v335 = vsel %vm334, %v333, 0
    %v336 = vshrl.u32 %v335, 5
    %v337 = vand.u32 %v335, 31
    %v338 = vsub.s32 32, %v337
    %v339 = vshrl.u32 683565275, %v338
    %v340 = vshll.u32 683565275, %v337
    %v341 = vshrl.u32 2475754826, %v338
    %v342 = vor.u32 %v340, %v341
    %v343 = vshll.u32 2475754826, %v337
    %v344 = vshrl.u32 2131351028, %v338
    %v345 = vor.u32 %v343, %v344
    %v346 = vshll.u32 2131351028, %v337
    %v347 = vshrl.u32 2102212464, %v338
    %v348 = vor.u32 %v346, %v347
    %v349 = vshll.u32 2102212464, %v337
    %v350 = vshrl.u32 920167782, %v338
    %v351 = vor.u32 %v349, %v350
    %v352 = vshll.u32 920167782, %v337
    %v353 = vshrl.u32 1326507024, %v338
    %v354 = vor.u32 %v352, %v353
    %vm355 = vcmp.lt.s32.totalorder %v336, 1
    %vm356 = vcmp.lt.s32.totalorder %v336, 2
    %vm357 = vcmp.lt.s32.totalorder %v336, 3
    %vm358 = vcmp.lt.s32.totalorder %v336, 4
    %v359 = vsel %vm355, %v339, %v342
    %v360 = vsel %vm358, %v348, 2102212464
    %v361 = vsel %vm357, %v345, %v360
    %v362 = vsel %vm356, %v359, %v361
    %v363 = vsel %vm355, %v342, %v345
    %v364 = vsel %vm358, %v351, 920167782
    %v365 = vsel %vm357, %v348, %v364
    %v366 = vsel %vm356, %v363, %v365
    %v367 = vsel %vm355, %v345, %v348
    %v368 = vsel %vm358, %v354, 1326507024
    %v369 = vsel %vm357, %v351, %v368
    %v370 = vsel %vm356, %v367, %v369
    %v371 = vshll.u32 %v331, 8
    %v372 = vand.u32 %v371, 65535
    %v373 = vshrl.u32 %v371, 16
    %v374 = vand.u32 %v370, 65535
    %v375 = vshrl.u32 %v370, 16
    %v376 = vmul.u32 %v372, %v374
    %v377 = vmul.u32 %v372, %v375
    %v378 = vmul.u32 %v373, %v374
    %v379 = vmul.u32 %v373, %v375
    %v380 = vshll.u32 %v377, 16
    %v381 = vshrl.u32 %v377, 16
    %v382 = vshll.u32 %v378, 16
    %v383 = vshrl.u32 %v378, 16
    %vm384 = vc.u32 %v376, %v380
    %v385 = vsel %vm384, 1, 0
    %v386 = vadd.s32 %v376, %v380
    %v387 = vadd.s32 %v379, %v385
    %vm388 = vc.u32 %v386, %v382
    %v389 = vsel %vm388, 1, 0
    %v390 = vadd.s32 %v386, %v382
    %v391 = vadd.s32 %v387, %v389
    %v392 = vadd.s32 %v391, %v381
    %v393 = vadd.s32 %v392, %v383
    %v394 = vand.u32 %v371, 65535
    %v395 = vshrl.u32 %v371, 16
    %v396 = vand.u32 %v366, 65535
    %v397 = vshrl.u32 %v366, 16
    %v398 = vmul.u32 %v394, %v396
    %v399 = vmul.u32 %v394, %v397
    %v400 = vmul.u32 %v395, %v396
    %v401 = vmul.u32 %v395, %v397
    %v402 = vshll.u32 %v399, 16
    %v403 = vshrl.u32 %v399, 16
    %v404 = vshll.u32 %v400, 16
    %v405 = vshrl.u32 %v400, 16
    %vm406 = vc.u32 %v398, %v402
    %v407 = vsel %vm406, 1, 0
    %v408 = vadd.s32 %v398, %v402
    %v409 = vadd.s32 %v401, %v407
    %vm410 = vc.u32 %v408, %v404
    %v411 = vsel %vm410, 1, 0
    %v412 = vadd.s32 %v408, %v404
    %v413 = vadd.s32 %v409, %v411
    %v414 = vadd.s32 %v413, %v403
    %v415 = vadd.s32 %v414, %v405
    %v416 = vmul.u32 %v371, %v362
    %v417 = vadd.s32 %v393, %v412
    %vm418 = vc.u32 %v393, %v412
    %v419 = vadd.s32 %v415, 1
    %v420 = vsel %vm418, %v419, %v415
    %v421 = vadd.s32 %v416, %v420
    %v422 = vadd.s32 %v421, 536870912
    %v423 = vshrl.u32 %v422, 30
    %v424 = vshll.u32 %v423, 30
    %v425 = vsub.s32 %v421, %v424
    %vm426 = vcmp.lt.s32.totalorder %v425, 0
    %v427 = vsub.s32 0, %v425
    %v428 = vsel %vm426, %v427, %v425
    %v429 = vclz %v428
    %v430 = vsub.s32 %v429, 2
    %vm431 = vcmp.gt.s32.totalorder 0, %v430
    %v432 = vsel %vm431, 0, %v430
    %v433 = vsub.s32 32, %v432
    %v434 = vshll.u32 %v425, %v432
    %v435 = vshrl.u32 %v417, %v433
    %v436 = vor.u32 %v434, %v435
    %v437 = vsub.s32 4294967266, %v432
    %v438 = vadd.s32 %v437, 127
    %v439 = vshll.u32 %v438, 23
    %v440 = vor.u32 4788187, %v439
    %v441 = vand.u32 2147483647, %v440
    %v443 = vcvt.s32.f32 %v436
    %v444 = vmul.f32 %v443, %v441
    %v445 = vxor.u32 %v444, 2147483648
    %v446 = vsel %vm325, %v445, %v444
    %v447 = vsub.s32 4, %v423
    %v448 = vsel %vm325, %v447, %v423
    %v449 = vsel %vm324, %v168, %v446
    %v450 = vsel %vm324, 0, %v448
    %v451 = vmul.f32 %v449, %v449
    %v452 = vmul.f32 %v451, -0.001358992
    %v453 = vadd.f32 %v452, 0.041655596
    %v454 = vmul.f32 %v451, %v453
    %v455 = vadd.f32 %v454, -0.4999988
    %v456 = vmul.f32 %v451, %v455
    %v457 = vadd.f32 1.0, %v456
    %v458 = vmul.f32 %v449, %v449
    %v459 = vmul.f32 %v458, -0.00019511016
    %v460 = vadd.f32 %v459, 0.008332121
    %v461 = vmul.f32 %v458, %v460
    %v462 = vadd.f32 %v461, -0.16666654
    %v463 = vmul.f32 %v458, %v462
    %v464 = vadd.f32 %v463, 1.0
    %v465 = vmul.f32 %v464, %v449
    %vm466 = vweird.f32 %v168
    %v467 = vand.u32 %v450, 3
    %vm468 = vcmp.lt.s32.totalorder %v467, 2
    %vm469 = vcmp.eq.s32.totalorder %v467, 0
    %v470 = vxor.u32 %v465, 2147483648
    %v471 = vsel %vm469, %v457, %v470
    %vm472 = vcmp.eq.s32.totalorder %v467, 2
    %v473 = vxor.u32 %v457, 2147483648
    %v474 = vsel %vm472, %v473, %v465
    %v475 = vsel %vm468, %v471, %v474
    %v476 = vsel %vm466, nan, %v475
    %v477 = vand.u32 2147483647, %v167
    %vm478 = vcmp.le.f32.partialorder %v477, 0.7853982
    %vm479 = vcmp.lt.s32.totalorder %v167, 0
    %v480 = vand.u32 %v167, 2139095040
    %v481 = vshrl.u32 %v480, 23
    %v482 = vsub.s32 %v481, 127
    %v483 = vand.u32 2147483647, %v167
    %v484 = vand.u32 %v483, 8388607
    %v485 = vor.u32 %v484, 8388608
    %v486 = vsub.s32 0, %v485
    %v487 = vadd.s32 %v482, 1
    %vm488 = vcmp.gt.s32.totalorder %v487, 0
    %v489 = vsel %vm488, %v487, 0
    %v490 = vshrl.u32 %v489, 5
    %v491 = vand.u32 %v489, 31
    %v492 = vsub.s32 32, %v491
    %v493 = vshrl.u32 683565275, %v492
    %v494 = vshll.u32 683565275, %v491
    %v495 = vshrl.u32 2475754826, %v492
    %v496 = vor.u32 %v494, %v495
    %v497 = vshll.u32 2475754826, %v491
    %v498 = vshrl.u32 2131351028, %v492
    %v499 = vor.u32 %v497, %v498
    %v500 = vshll.u32 2131351028, %v491
    %v501 = vshrl.u32 2102212464, %v492
    %v502 = vor.u32 %v500, %v501
    %v503 = vshll.u32 2102212464, %v491
    %v504 = vshrl.u32 920167782, %v492
    %v505 = vor.u32 %v503, %v504
    %v506 = vshll.u32 920167782, %v491
    %v507 = vshrl.u32 1326507024, %v492
    %v508 = vor.u32 %v506, %v507
    %vm509 = vcmp.lt.s32.totalorder %v490, 1
    %vm510 = vcmp.lt.s32.totalorder %v490, 2
    %vm511 = vcmp.lt.s32.totalorder %v490, 3
    %vm512 = vcmp.lt.s32.totalorder %v490, 4
    %v513 = vsel %vm509, %v493, %v496
    %v514 = vsel %vm512, %v502, 2102212464
    %v515 = vsel %vm511, %v499, %v514
    %v516 = vsel %vm510, %v513, %v515
    %v517 = vsel %vm509, %v496, %v499
    %v518 = vsel %vm512, %v505, 920167782
    %v519 = vsel %vm511, %v502, %v518
    %v520 = vsel %vm510, %v517, %v519
    %v521 = vsel %vm509, %v499, %v502
    %v522 = vsel %vm512, %v508, 1326507024
    %v523 = vsel %vm511, %v505, %v522
    %v524 = vsel %vm510, %v521, %v523
    %v525 = vshll.u32 %v485, 8
    %v526 = vand.u32 %v525, 65535
    %v527 = vshrl.u32 %v525, 16
    %v528 = vand.u32 %v524, 65535
    %v529 = vshrl.u32 %v524, 16
    %v530 = vmul.u32 %v526, %v528
    %v531 = vmul.u32 %v526, %v529
    %v532 = vmul.u32 %v527, %v528
    %v533 = vmul.u32 %v527, %v529
    %v534 = vshll.u32 %v531, 16
    %v535 = vshrl.u32 %v531, 16
    %v536 = vshll.u32 %v532, 16
    %v537 = vshrl.u32 %v532, 16
    %vm538 = vc.u32 %v530, %v534
    %v539 = vsel %vm538, 1, 0
    %v540 = vadd.s32 %v530, %v534
    %v541 = vadd.s32 %v533, %v539
    %vm542 = vc.u32 %v540, %v536
    %v543 = vsel %vm542, 1, 0
    %v544 = vadd.s32 %v540, %v536
    %v545 = vadd.s32 %v541, %v543
    %v546 = vadd.s32 %v545, %v535
    %v547 = vadd.s32 %v546, %v537
    %v548 = vand.u32 %v525, 65535
    %v549 = vshrl.u32 %v525, 16
    %v550 = vand.u32 %v520, 65535
    %v551 = vshrl.u32 %v520, 16
    %v552 = vmul.u32 %v548, %v550
    %v553 = vmul.u32 %v548, %v551
    %v554 = vmul.u32 %v549, %v550
    %v555 = vmul.u32 %v549, %v551
    %v556 = vshll.u32 %v553, 16
    %v557 = vshrl.u32 %v553, 16
    %v558 = vshll.u32 %v554, 16
    %v559 = vshrl.u32 %v554, 16
    %vm560 = vc.u32 %v552, %v556
    %v561 = vsel %vm560, 1, 0
    %v562 = vadd.s32 %v552, %v556
    %v563 = vadd.s32 %v555, %v561
    %vm564 = vc.u32 %v562, %v558
    %v565 = vsel %vm564, 1, 0
    %v566 = vadd.s32 %v562, %v558
    %v567 = vadd.s32 %v563, %v565
    %v568 = vadd.s32 %v567, %v557
    %v569 = vadd.s32 %v568, %v559
    %v570 = vmul.u32 %v525, %v516
    %v571 = vadd.s32 %v547, %v566
    %vm572 = vc.u32 %v547, %v566
    %v573 = vadd.s32 %v569, 1
    %v574 = vsel %vm572, %v573, %v569
    %v575 = vadd.s32 %v570, %v574
    %v576 = vadd.s32 %v575, 536870912
    %v577 = vshrl.u32 %v576, 30
    %v578 = vshll.u32 %v577, 30
    %v579 = vsub.s32 %v575, %v578
    %vm580 = vcmp.lt.s32.totalorder %v579, 0
    %v581 = vsub.s32 0, %v579
    %v582 = vsel %vm580, %v581, %v579
    %v583 = vclz %v582
    %v584 = vsub.s32 %v583, 2
    %vm585 = vcmp.gt.s32.totalorder 0, %v584
    %v586 = vsel %vm585, 0, %v584
    %v587 = vsub.s32 32, %v586
    %v588 = vshll.u32 %v579, %v586
    %v589 = vshrl.u32 %v571, %v587
    %v590 = vor.u32 %v588, %v589
    %v591 = vsub.s32 4294967266, %v586
    %v592 = vadd.s32 %v591, 127
    %v593 = vshll.u32 %v592, 23
    %v594 = vor.u32 4788187, %v593
    %v595 = vand.u32 2147483647, %v594
    %v597 = vcvt.s32.f32 %v590
    %v598 = vmul.f32 %v597, %v595
    %v599 = vxor.u32 %v598, 2147483648
    %v600 = vsel %vm479, %v599, %v598
    %v601 = vsub.s32 4, %v577
    %v602 = vsel %vm479, %v601, %v577
    %v603 = vsel %vm478, %v167, %v600
    %v604 = vsel %vm478, 0, %v602
    %v605 = vmul.f32 %v603, %v603
    %v606 = vmul.f32 %v605, -0.001358992
    %v607 = vadd.f32 %v606, 0.041655596
    %v608 = vmul.f32 %v605, %v607
    %v609 = vadd.f32 %v608, -0.4999988
    %v610 = vmul.f32 %v605, %v609
    %v611 = vadd.f32 1.0, %v610
    %v612 = vmul.f32 %v603, %v603
    %v613 = vmul.f32 %v612, -0.00019511016
    %v614 = vadd.f32 %v613, 0.008332121
    %v615 = vmul.f32 %v612, %v614
    %v616 = vadd.f32 %v615, -0.16666654
    %v617 = vmul.f32 %v612, %v616
    %v618 = vadd.f32 %v617, 1.0
    %v619 = vmul.f32 %v618, %v603
    %vm620 = vweird.f32 %v167
    %v621 = vadd.s32 %v604, 3
    %v622 = vand.u32 %v621, 3
    %vm623 = vcmp.lt.s32.totalorder %v622, 2
    %vm624 = vcmp.eq.s32.totalorder %v622, 0
    %v625 = vxor.u32 %v619, 2147483648
    %v626 = vsel %vm624, %v611, %v625
    %vm627 = vcmp.eq.s32.totalorder %v622, 2
    %v628 = vxor.u32 %v611, 2147483648
    %v629 = vsel %vm627, %v628, %v619
    %v630 = vsel %vm623, %v626, %v629
    %v631 = vsel %vm620, nan, %v630
    %v632 = vand.u32 2147483647, %v168
    %vm633 = vcmp.le.f32.partialorder %v632, 0.7853982
    %vm634 = vcmp.lt.s32.totalorder %v168, 0
    %v635 = vand.u32 %v168, 2139095040
    %v636 = vshrl.u32 %v635, 23
    %v637 = vsub.s32 %v636, 127
    %v638 = vand.u32 2147483647, %v168
    %v639 = vand.u32 %v638, 8388607
    %v640 = vor.u32 %v639, 8388608
    %v641 = vsub.s32 0, %v640
    %v642 = vadd.s32 %v637, 1
    %vm643 = vcmp.gt.s32.totalorder %v642, 0
    %v644 = vsel %vm643, %v642, 0
    %v645 = vshrl.u32 %v644, 5
    %v646 = vand.u32 %v644, 31
    %v647 = vsub.s32 32, %v646
    %v648 = vshrl.u32 683565275, %v647
    %v649 = vshll.u32 683565275, %v646
    %v650 = vshrl.u32 2475754826, %v647
    %v651 = vor.u32 %v649, %v650
    %v652 = vshll.u32 2475754826, %v646
    %v653 = vshrl.u32 2131351028, %v647
    %v654 = vor.u32 %v652, %v653
    %v655 = vshll.u32 2131351028, %v646
    %v656 = vshrl.u32 2102212464, %v647
    %v657 = vor.u32 %v655, %v656
    %v658 = vshll.u32 2102212464, %v646
    %v659 = vshrl.u32 920167782, %v647
    %v660 = vor.u32 %v658, %v659
    %v661 = vshll.u32 920167782, %v646
    %v662 = vshrl.u32 1326507024, %v647
    %v663 = vor.u32 %v661, %v662
    %vm664 = vcmp.lt.s32.totalorder %v645, 1
    %vm665 = vcmp.lt.s32.totalorder %v645, 2
    %vm666 = vcmp.lt.s32.totalorder %v645, 3
    %vm667 = vcmp.lt.s32.totalorder %v645, 4
    %v668 = vsel %vm664, %v648, %v651
    %v669 = vsel %vm667, %v657, 2102212464
    %v670 = vsel %vm666, %v654, %v669
    %v671 = vsel %vm665, %v668, %v670
    %v672 = vsel %vm664, %v651, %v654
    %v673 = vsel %vm667, %v660, 920167782
    %v674 = vsel %vm666, %v657, %v673
    %v675 = vsel %vm665, %v672, %v674
    %v676 = vsel %vm664, %v654, %v657
    %v677 = vsel %vm667, %v663, 1326507024
    %v678 = vsel %vm666, %v660, %v677
    %v679 = vsel %vm665, %v676, %v678
    %v680 = vshll.u32 %v640, 8
    %v681 = vand.u32 %v680, 65535
    %v682 = vshrl.u32 %v680, 16
    %v683 = vand.u32 %v679, 65535
    %v684 = vshrl.u32 %v679, 16
    %v685 = vmul.u32 %v681, %v683
    %v686 = vmul.u32 %v681, %v684
    %v687 = vmul.u32 %v682, %v683
    %v688 = vmul.u32 %v682, %v684
    %v689 = vshll.u32 %v686, 16
    %v690 = vshrl.u32 %v686, 16
    %v691 = vshll.u32 %v687, 16
    %v692 = vshrl.u32 %v687, 16
    %vm693 = vc.u32 %v685, %v689
    %v694 = vsel %vm693, 1, 0
    %v695 = vadd.s32 %v685, %v689
    %v696 = vadd.s32 %v688, %v694
    %vm697 = vc.u32 %v695, %v691
    %v698 = vsel %vm697, 1, 0
    %v699 = vadd.s32 %v695, %v691
    %v700 = vadd.s32 %v696, %v698
    %v701 = vadd.s32 %v700, %v690
    %v702 = vadd.s32 %v701, %v692
    %v703 = vand.u32 %v680, 65535
    %v704 = vshrl.u32 %v680, 16
    %v705 = vand.u32 %v675, 65535
    %v706 = vshrl.u32 %v675, 16
    %v707 = vmul.u32 %v703, %v705
    %v708 = vmul.u32 %v703, %v706
    %v709 = vmul.u32 %v704, %v705
    %v710 = vmul.u32 %v704, %v706
    %v711 = vshll.u32 %v708, 16
    %v712 = vshrl.u32 %v708, 16
    %v713 = vshll.u32 %v709, 16
    %v714 = vshrl.u32 %v709, 16
    %vm715 = vc.u32 %v707, %v711
    %v716 = vsel %vm715, 1, 0
    %v717 = vadd.s32 %v707, %v711
    %v718 = vadd.s32 %v710, %v716
    %vm719 = vc.u32 %v717, %v713
    %v720 = vsel %vm719, 1, 0
    %v721 = vadd.s32 %v717, %v713
    %v722 = vadd.s32 %v718, %v720
    %v723 = vadd.s32 %v722, %v712
    %v724 = vadd.s32 %v723, %v714
    %v725 = vmul.u32 %v680, %v671
    %v726 = vadd.s32 %v702, %v721
    %vm727 = vc.u32 %v702, %v721
    %v728 = vadd.s32 %v724, 1
    %v729 = vsel %vm727, %v728, %v724
    %v730 = vadd.s32 %v725, %v729
    %v731 = vadd.s32 %v730, 536870912
    %v732 = vshrl.u32 %v731, 30
    %v733 = vshll.u32 %v732, 30
    %v734 = vsub.s32 %v730, %v733
    %vm735 = vcmp.lt.s32.totalorder %v734, 0
    %v736 = vsub.s32 0, %v734
    %v737 = vsel %vm735, %v736, %v734
    %v738 = vclz %v737
    %v739 = vsub.s32 %v738, 2
    %vm740 = vcmp.gt.s32.totalorder 0, %v739
    %v741 = vsel %vm740, 0, %v739
    %v742 = vsub.s32 32, %v741
    %v743 = vshll.u32 %v734, %v741
    %v744 = vshrl.u32 %v726, %v742
    %v745 = vor.u32 %v743, %v744
    %v746 = vsub.s32 4294967266, %v741
    %v747 = vadd.s32 %v746, 127
    %v748 = vshll.u32 %v747, 23
    %v749 = vor.u32 4788187, %v748
    %v750 = vand.u32 2147483647, %v749
    %v752 = vcvt.s32.f32 %v745
    %v753 = vmul.f32 %v752, %v750
    %v754 = vxor.u32 %v753, 2147483648
    %v755 = vsel %vm634, %v754, %v753
    %v756 = vsub.s32 4, %v732
    %v757 = vsel %vm634, %v756, %v732
    %v758 = vsel %vm633, %v168, %v755
    %v759 = vsel %vm633, 0, %v757
    %v760 = vmul.f32 %v758, %v758
    %v761 = vmul.f32 %v760, -0.001358992
    %v762 = vadd.f32 %v761, 0.041655596
    %v763 = vmul.f32 %v760, %v762
    %v764 = vadd.f32 %v763, -0.4999988
    %v765 = vmul.f32 %v760, %v764
    %v766 = vadd.f32 1.0, %v765
    %v767 = vmul.f32 %v758, %v758
    %v768 = vmul.f32 %v767, -0.00019511016
    %v769 = vadd.f32 %v768, 0.008332121
    %v770 = vmul.f32 %v767, %v769
    %v771 = vadd.f32 %v770, -0.16666654
    %v772 = vmul.f32 %v767, %v771
    %v773 = vadd.f32 %v772, 1.0
    %v774 = vmul.f32 %v773, %v758
    %vm775 = vweird.f32 %v168
    %v776 = vadd.s32 %v759, 3
    %v777 = vand.u32 %v776, 3
    %vm778 = vcmp.lt.s32.totalorder %v777, 2
    %vm779 = vcmp.eq.s32.totalorder %v777, 0
    %v780 = vxor.u32 %v774, 2147483648
    %v781 = vsel %vm779, %v766, %v780
    %vm782 = vcmp.eq.s32.totalorder %v777, 2
    %v783 = vxor.u32 %v766, 2147483648
    %v784 = vsel %vm782, %v783, %v774
    %v785 = vsel %vm778, %v781, %v784
    %v786 = vsel %vm775, nan, %v785
    %v787 = vld [vmem:[%s7] sm:$0xff]
    %v788 = vld [vmem:[%s7 + $0x8] sm:$0xff]
    %v789 = vld [vmem:[%s7 + $0x10] sm:$0xff]
    %v790 = vld [vmem:[%s7 + $0x18] sm:$0xff]
    %v791 = vld [vmem:[%s9] sm:$0xff]
    %v792 = vld [vmem:[%s9 + $0x8] sm:$0xff]
    %v793 = vld [vmem:[%s9 + $0x10] sm:$0xff]
    %v794 = vld [vmem:[%s9 + $0x18] sm:$0xff]
    %796 = vset.pattern.permute.xlu0 0
    %797 = vperm.xlu0 %796, %v791
    %v798 = vpop.permute.xlu0 %797
    %801 = vset.pattern.permute.xlu0 0
    %802 = vperm.xlu0 %801, %v792
    %v803 = vpop.permute.xlu0 %802
    %806 = vset.pattern.permute.xlu0 0
    %807 = vperm.xlu0 %806, %v793
    %v808 = vpop.permute.xlu0 %807
    %811 = vset.pattern.permute.xlu0 0
    %812 = vperm.xlu0 %811, %v794
    %v813 = vpop.permute.xlu0 %812
    %vm815 = vcmask 261120
    %v817 = vsel %vm815, %v787, 0
    %v820 = vsel %vm815, %v788, 0
    %v823 = vsel %vm815, %v789, 0
    %v826 = vsel %vm815, %v790, 0
    %828 = vmatpush.msra.mxu0 0.0
    %829 = vmatpush.msra.mxu0 0.0
    %830 = vmatpush.msra.mxu0 0.0
    %831 = vmatpush.msra.mxu0 0.0
    %832 = vmatpush.msra.mxu0 0.0
    %833 = vmatpush.msra.mxu0 0.0
    %834 = vmatpush.msra.mxu0 0.0
    %835 = vmatpush.msra.mxu0 0.0
    %836 = vmatpush.msra.mxu0 0.0
    %837 = vmatpush.msra.mxu0 0.0
    %838 = vmatpush.msra.mxu0 0.0
    %839 = vmatpush.msra.mxu0 0.0
    %840 = vmatpush.msra.mxu0 %v786
    %841 = vmatpush.msra.mxu0 %v631
    %842 = vmatpush.msra.mxu0 %v476
    %843 = vmatpush.msra.mxu0 %v322
    %844 = vmatmul.f32.gmra.mxu0 %v817
    %v845 = vpop.f32.mrf.mxu0
    %v846 = vadd.f32 %v798, %v845
    %847 = vmatmul.f32.gmra.mxu0 %v820
    %v848 = vpop.f32.mrf.mxu0
    %v849 = vadd.f32 %v803, %v848
    %850 = vmatmul.f32.gmra.mxu0 %v823
    %v851 = vpop.f32.mrf.mxu0
    %v852 = vadd.f32 %v808, %v851
    %853 = vmatmul.f32.gmra.mxu0 %v826
    %v854 = vpop.f32.mrf.mxu0
    %v855 = vadd.f32 %v813, %v854
    %856 = vdwg.mxu0
    %v857 = vld [vmem:[%s11] sm:$0xff]
    %v858 = vld [vmem:[%s11 + $0x8] sm:$0xff]
    %v859 = vld [vmem:[%s11 + $0x10] sm:$0xff]
    %v860 = vld [vmem:[%s11 + $0x18] sm:$0xff]
    %v861 = vxor.u32 %v846, 2147483648
    %v862 = vxor.u32 %v849, 2147483648
    %v863 = vxor.u32 %v852, 2147483648
    %v864 = vxor.u32 %v855, 2147483648
    %v865 = vmul.f32 %v861, 1.442695
    %v866 = vpow.pop %v865
    %v867 = vmul.f32 %v862, 1.442695
    %v868 = vpow.pop %v867
    %v869 = vmul.f32 %v863, 1.442695
    %v870 = vpow.pop %v869
    %v871 = vmul.f32 %v864, 1.442695
    %v872 = vpow.pop %v871
    %v873 = vadd.f32 %v866, 1.0
    %v874 = vadd.f32 %v868, 1.0
    %v875 = vadd.f32 %v870, 1.0
    %v876 = vadd.f32 %v872, 1.0
    %v877 = vrcp.pop %v873
    %v878 = vmul.f32 %v873, %v877
    %v879 = vsub.f32 1.0, %v878
    %v880 = vmul.f32 %v877, %v879
    %v881 = vadd.f32 %v877, %v880
    %vm882 = vweird.f32 %v873
    %vm883 = vweird.f32 %v877
    %vm884 = vmor %vm882, %vm883
    %v885 = vsel %vm884, %v877, %v881
    %v886 = vand.u32 2147483647, %v873
    %vm887 = vcmp.eq.f32.partialorder %v886, 8.507059e+37
    %v888 = vand.u32 %v873, 2147483648
    %v889 = vor.u32 1.1754944e-38, %v888
    %v890 = vsel %vm887, %v889, %v885
    %v891 = vmul.f32 1.0, %v890
    %v892 = vrcp.pop %v874
    %v893 = vmul.f32 %v874, %v892
    %v894 = vsub.f32 1.0, %v893
    %v895 = vmul.f32 %v892, %v894
    %v896 = vadd.f32 %v892, %v895
    %vm897 = vweird.f32 %v874
    %vm898 = vweird.f32 %v892
    %vm899 = vmor %vm897, %vm898
    %v900 = vsel %vm899, %v892, %v896
    %v901 = vand.u32 2147483647, %v874
    %vm902 = vcmp.eq.f32.partialorder %v901, 8.507059e+37
    %v903 = vand.u32 %v874, 2147483648
    %v904 = vor.u32 1.1754944e-38, %v903
    %v905 = vsel %vm902, %v904, %v900
    %v906 = vmul.f32 1.0, %v905
    %v907 = vrcp.pop %v875
    %v908 = vmul.f32 %v875, %v907
    %v909 = vsub.f32 1.0, %v908
    %v910 = vmul.f32 %v907, %v909
    %v911 = vadd.f32 %v907, %v910
    %vm912 = vweird.f32 %v875
    %vm913 = vweird.f32 %v907
    %vm914 = vmor %vm912, %vm913
    %v915 = vsel %vm914, %v907, %v911
    %v916 = vand.u32 2147483647, %v875
    %vm917 = vcmp.eq.f32.partialorder %v916, 8.507059e+37
    %v918 = vand.u32 %v875, 2147483648
    %v919 = vor.u32 1.1754944e-38, %v918
    %v920 = vsel %vm917, %v919, %v915
    %v921 = vmul.f32 1.0, %v920
    %v922 = vrcp.pop %v876
    %v923 = vmul.f32 %v876, %v922
    %v924 = vsub.f32 1.0, %v923
    %v925 = vmul.f32 %v922, %v924
    %v926 = vadd.f32 %v922, %v925
    %vm927 = vweird.f32 %v876
    %vm928 = vweird.f32 %v922
    %vm929 = vmor %vm927, %vm928
    %v930 = vsel %vm929, %v922, %v926
    %v931 = vand.u32 2147483647, %v876
    %vm932 = vcmp.eq.f32.partialorder %v931, 8.507059e+37
    %v933 = vand.u32 %v876, 2147483648
    %v934 = vor.u32 1.1754944e-38, %v933
    %v935 = vsel %vm932, %v934, %v930
    %v936 = vmul.f32 1.0, %v935
    %v937 = vmul.f32 %v846, %v891
    %v938 = vmul.f32 %v849, %v906
    %v939 = vmul.f32 %v852, %v921
    %v940 = vmul.f32 %v855, %v936
    %v941 = vld [vmem:[%s13] sm:$0xff]
    %v942 = vld [vmem:[%s13 + $0x8] sm:$0xff]
    %v943 = vld [vmem:[%s13 + $0x10] sm:$0xff]
    %v944 = vld [vmem:[%s13 + $0x18] sm:$0xff]
    %946 = vset.pattern.permute.xlu0 0
    %947 = vperm.xlu0 %946, %v941
    %v948 = vpop.permute.xlu0 %947
    %951 = vset.pattern.permute.xlu0 0
    %952 = vperm.xlu0 %951, %v942
    %v953 = vpop.permute.xlu0 %952
    %956 = vset.pattern.permute.xlu0 0
    %957 = vperm.xlu0 %956, %v943
    %v958 = vpop.permute.xlu0 %957
    %961 = vset.pattern.permute.xlu0 0
    %962 = vperm.xlu0 %961, %v944
    %v963 = vpop.permute.xlu0 %962
    %v966 = vsel %vm815, %v857, 0
    %v969 = vsel %vm815, %v858, 0
    %v972 = vsel %vm815, %v859, 0
    %v975 = vsel %vm815, %v860, 0
    %977 = vmatpush.msra.mxu0 0.0
    %978 = vmatpush.msra.mxu0 0.0
    %979 = vmatpush.msra.mxu0 0.0
    %980 = vmatpush.msra.mxu0 0.0
    %981 = vmatpush.msra.mxu0 0.0
    %982 = vmatpush.msra.mxu0 0.0
    %983 = vmatpush.msra.mxu0 0.0
    %984 = vmatpush.msra.mxu0 0.0
    %985 = vmatpush.msra.mxu0 0.0
    %986 = vmatpush.msra.mxu0 0.0
    %987 = vmatpush.msra.mxu0 0.0
    %988 = vmatpush.msra.mxu0 0.0
    %989 = vmatpush.msra.mxu0 %v940
    %990 = vmatpush.msra.mxu0 %v939
    %991 = vmatpush.msra.mxu0 %v938
    %992 = vmatpush.msra.mxu0 %v937
    %993 = vmatmul.f32.gmra.mxu0 %v966
    %v994 = vpop.f32.mrf.mxu0
    %v995 = vadd.f32 %v948, %v994
    %996 = vmatmul.f32.gmra.mxu0 %v969
    %v997 = vpop.f32.mrf.mxu0
    %v998 = vadd.f32 %v953, %v997
    %999 = vmatmul.f32.gmra.mxu0 %v972
    %v1000 = vpop.f32.mrf.mxu0
    %v1001 = vadd.f32 %v958, %v1000
    %1002 = vmatmul.f32.gmra.mxu0 %v975
    %v1003 = vpop.f32.mrf.mxu0
    %v1004 = vadd.f32 %v963, %v1003
    %1005 = vdwg.mxu0
    %v1006 = vxor.u32 %v995, 2147483648
    %v1007 = vxor.u32 %v998, 2147483648
    %v1008 = vxor.u32 %v1001, 2147483648
    %v1009 = vxor.u32 %v1004, 2147483648
    %v1010 = vmul.f32 %v1006, 1.442695
    %v1011 = vpow.pop %v1010
    %v1012 = vmul.f32 %v1007, 1.442695
    %v1013 = vpow.pop %v1012
    %v1014 = vmul.f32 %v1008, 1.442695
    %v1015 = vpow.pop %v1014
    %v1016 = vmul.f32 %v1009, 1.442695
    %v1017 = vpow.pop %v1016
    %v1018 = vadd.f32 %v1011, 1.0
    %v1019 = vadd.f32 %v1013, 1.0
    %v1020 = vadd.f32 %v1015, 1.0
    %v1021 = vadd.f32 %v1017, 1.0
    %v1022 = vrcp.pop %v1018
    %v1023 = vmul.f32 %v1018, %v1022
    %v1024 = vsub.f32 1.0, %v1023
    %v1025 = vmul.f32 %v1022, %v1024
    %v1026 = vadd.f32 %v1022, %v1025
    %vm1027 = vweird.f32 %v1018
    %vm1028 = vweird.f32 %v1022
    %vm1029 = vmor %vm1027, %vm1028
    %v1030 = vsel %vm1029, %v1022, %v1026
    %v1031 = vand.u32 2147483647, %v1018
    %vm1032 = vcmp.eq.f32.partialorder %v1031, 8.507059e+37
    %v1033 = vand.u32 %v1018, 2147483648
    %v1034 = vor.u32 1.1754944e-38, %v1033
    %v1035 = vsel %vm1032, %v1034, %v1030
    %v1036 = vmul.f32 1.0, %v1035
    %v1037 = vrcp.pop %v1019
    %v1038 = vmul.f32 %v1019, %v1037
    %v1039 = vsub.f32 1.0, %v1038
    %v1040 = vmul.f32 %v1037, %v1039
    %v1041 = vadd.f32 %v1037, %v1040
    %vm1042 = vweird.f32 %v1019
    %vm1043 = vweird.f32 %v1037
    %vm1044 = vmor %vm1042, %vm1043
    %v1045 = vsel %vm1044, %v1037, %v1041
    %v1046 = vand.u32 2147483647, %v1019
    %vm1047 = vcmp.eq.f32.partialorder %v1046, 8.507059e+37
    %v1048 = vand.u32 %v1019, 2147483648
    %v1049 = vor.u32 1.1754944e-38, %v1048
    %v1050 = vsel %vm1047, %v1049, %v1045
    %v1051 = vmul.f32 1.0, %v1050
    %v1052 = vrcp.pop %v1020
    %v1053 = vmul.f32 %v1020, %v1052
    %v1054 = vsub.f32 1.0, %v1053
    %v1055 = vmul.f32 %v1052, %v1054
    %v1056 = vadd.f32 %v1052, %v1055
    %vm1057 = vweird.f32 %v1020
    %vm1058 = vweird.f32 %v1052
    %vm1059 = vmor %vm1057, %vm1058
    %v1060 = vsel %vm1059, %v1052, %v1056
    %v1061 = vand.u32 2147483647, %v1020
    %vm1062 = vcmp.eq.f32.partialorder %v1061, 8.507059e+37
    %v1063 = vand.u32 %v1020, 2147483648
    %v1064 = vor.u32 1.1754944e-38, %v1063
    %v1065 = vsel %vm1062, %v1064, %v1060
    %v1066 = vmul.f32 1.0, %v1065
    %v1067 = vrcp.pop %v1021
    %v1068 = vmul.f32 %v1021, %v1067
    %v1069 = vsub.f32 1.0, %v1068
    %v1070 = vmul.f32 %v1067, %v1069
    %v1071 = vadd.f32 %v1067, %v1070
    %vm1072 = vweird.f32 %v1021
    %vm1073 = vweird.f32 %v1067
    %vm1074 = vmor %vm1072, %vm1073
    %v1075 = vsel %vm1074, %v1067, %v1071
    %v1076 = vand.u32 2147483647, %v1021
    %vm1077 = vcmp.eq.f32.partialorder %v1076, 8.507059e+37
    %v1078 = vand.u32 %v1021, 2147483648
    %v1079 = vor.u32 1.1754944e-38, %v1078
    %v1080 = vsel %vm1077, %v1079, %v1075
    %v1081 = vmul.f32 1.0, %v1080
    %v1082 = vmul.f32 %v995, %v1036
    %v1083 = vmul.f32 %v998, %v1051
    %v1084 = vmul.f32 %v1001, %v1066
    %v1085 = vmul.f32 %v1004, %v1081
    %v1086 = vld [vmem:[%s15] sm:$0xff]
    %v1087 = vld [vmem:[%s15 + $0x8] sm:$0xff]
    %v1088 = vld [vmem:[%s15 + $0x10] sm:$0xff]
    %v1089 = vld [vmem:[%s15 + $0x18] sm:$0xff]
    %v1090 = vld [vmem:[%s15 + $0x20] sm:$0xff]
    %v1091 = vld [vmem:[%s15 + $0x28] sm:$0xff]
    %v1092 = vld [vmem:[%s15 + $0x30] sm:$0xff]
    %v1093 = vld [vmem:[%s15 + $0x38] sm:$0xff]
    %v1094 = vld [vmem:[%s15 + $0x40] sm:$0xff]
    %v1095 = vld [vmem:[%s15 + $0x48] sm:$0xff]
    %v1096 = vld [vmem:[%s15 + $0x50] sm:$0xff]
    %v1097 = vld [vmem:[%s15 + $0x58] sm:$0xff]
    %v1098 = vld [vmem:[%s15 + $0x60] sm:$0xff]
    %v1099 = vld [vmem:[%s15 + $0x68] sm:$0xff]
    %v1100 = vld [vmem:[%s15 + $0x70] sm:$0xff]
    %v1101 = vld [vmem:[%s17] sm:$0xff]
    %v1102 = vld [vmem:[%s17 + $0x8] sm:$0xff]
    %v1103 = vld [vmem:[%s17 + $0x10] sm:$0xff]
    %v1104 = vld [vmem:[%s17 + $0x18] sm:$0xff]
    %v1105 = vld [vmem:[%s17 + $0x20] sm:$0xff]
    %v1106 = vld [vmem:[%s17 + $0x28] sm:$0xff]
    %v1107 = vld [vmem:[%s17 + $0x30] sm:$0xff]
    %v1108 = vld [vmem:[%s17 + $0x38] sm:$0xff]
    %v1109 = vld [vmem:[%s17 + $0x40] sm:$0xff]
    %v1110 = vld [vmem:[%s17 + $0x48] sm:$0xff]
    %v1111 = vld [vmem:[%s17 + $0x50] sm:$0xff]
    %v1112 = vld [vmem:[%s17 + $0x58] sm:$0xff]
    %v1113 = vld [vmem:[%s17 + $0x60] sm:$0xff]
    %v1114 = vld [vmem:[%s17 + $0x68] sm:$0xff]
    %v1115 = vld [vmem:[%s17 + $0x70] sm:$0xff]
    %1117 = vset.pattern.permute.xlu0 0
    %1118 = vperm.xlu0 %1117, %v1101
    %v1119 = vpop.permute.xlu0 %1118
    %1122 = vset.pattern.permute.xlu0 0
    %1123 = vperm.xlu0 %1122, %v1102
    %v1124 = vpop.permute.xlu0 %1123
    %1127 = vset.pattern.permute.xlu0 0
    %1128 = vperm.xlu0 %1127, %v1103
    %v1129 = vpop.permute.xlu0 %1128
    %1132 = vset.pattern.permute.xlu0 0
    %1133 = vperm.xlu0 %1132, %v1104
    %v1134 = vpop.permute.xlu0 %1133
    %1137 = vset.pattern.permute.xlu0 0
    %1138 = vperm.xlu0 %1137, %v1105
    %v1139 = vpop.permute.xlu0 %1138
    %1142 = vset.pattern.permute.xlu0 0
    %1143 = vperm.xlu0 %1142, %v1106
    %v1144 = vpop.permute.xlu0 %1143
    %1147 = vset.pattern.permute.xlu0 0
    %1148 = vperm.xlu0 %1147, %v1107
    %v1149 = vpop.permute.xlu0 %1148
    %1152 = vset.pattern.permute.xlu0 0
    %1153 = vperm.xlu0 %1152, %v1108
    %v1154 = vpop.permute.xlu0 %1153
    %1157 = vset.pattern.permute.xlu0 0
    %1158 = vperm.xlu0 %1157, %v1109
    %v1159 = vpop.permute.xlu0 %1158
    %1162 = vset.pattern.permute.xlu0 0
    %1163 = vperm.xlu0 %1162, %v1110
    %v1164 = vpop.permute.xlu0 %1163
    %1167 = vset.pattern.permute.xlu0 0
    %1168 = vperm.xlu0 %1167, %v1111
    %v1169 = vpop.permute.xlu0 %1168
    %1172 = vset.pattern.permute.xlu0 0
    %1173 = vperm.xlu0 %1172, %v1112
    %v1174 = vpop.permute.xlu0 %1173
    %1177 = vset.pattern.permute.xlu0 0
    %1178 = vperm.xlu0 %1177, %v1113
    %v1179 = vpop.permute.xlu0 %1178
    %1182 = vset.pattern.permute.xlu0 0
    %1183 = vperm.xlu0 %1182, %v1114
    %v1184 = vpop.permute.xlu0 %1183
    %1187 = vset.pattern.permute.xlu0 0
    %1188 = vperm.xlu0 %1187, %v1115
    %v1189 = vpop.permute.xlu0 %1188
    %v1192 = vsel %vm815, %v1086, 0
    %v1195 = vsel %vm815, %v1087, 0
    %v1198 = vsel %vm815, %v1088, 0
    %v1201 = vsel %vm815, %v1089, 0
    %v1204 = vsel %vm815, %v1090, 0
    %v1207 = vsel %vm815, %v1091, 0
    %v1210 = vsel %vm815, %v1092, 0
    %v1213 = vsel %vm815, %v1093, 0
    %v1216 = vsel %vm815, %v1094, 0
    %v1219 = vsel %vm815, %v1095, 0
    %v1222 = vsel %vm815, %v1096, 0
    %v1225 = vsel %vm815, %v1097, 0
    %v1228 = vsel %vm815, %v1098, 0
    %v1231 = vsel %vm815, %v1099, 0
    %v1234 = vsel %vm815, %v1100, 0
    %1236 = vmatpush.msra.mxu0 0.0
    %1237 = vmatpush.msra.mxu0 0.0
    %1238 = vmatpush.msra.mxu0 0.0
    %1239 = vmatpush.msra.mxu0 0.0
    %1240 = vmatpush.msra.mxu0 0.0
    %1241 = vmatpush.msra.mxu0 0.0
    %1242 = vmatpush.msra.mxu0 0.0
    %1243 = vmatpush.msra.mxu0 0.0
    %1244 = vmatpush.msra.mxu0 0.0
    %1245 = vmatpush.msra.mxu0 0.0
    %1246 = vmatpush.msra.mxu0 0.0
    %1247 = vmatpush.msra.mxu0 0.0
    %1248 = vmatpush.msra.mxu0 %v1085
    %1249 = vmatpush.msra.mxu0 %v1084
    %1250 = vmatpush.msra.mxu0 %v1083
    %1251 = vmatpush.msra.mxu0 %v1082
    %1252 = vmatmul.f32.gmra.mxu0 %v1192
    %v1253 = vpop.f32.mrf.mxu0
    %v1254 = vadd.f32 %v1119, %v1253
    %1255 = vmatmul.f32.gmra.mxu0 %v1195
    %v1256 = vpop.f32.mrf.mxu0
    %v1257 = vadd.f32 %v1124, %v1256
    %1258 = vmatmul.f32.gmra.mxu0 %v1198
    %v1259 = vpop.f32.mrf.mxu0
    %v1260 = vadd.f32 %v1129, %v1259
    %1261 = vmatmul.f32.gmra.mxu0 %v1201
    %v1262 = vpop.f32.mrf.mxu0
    %v1263 = vadd.f32 %v1134, %v1262
    %1264 = vmatmul.f32.gmra.mxu0 %v1204
    %v1265 = vpop.f32.mrf.mxu0
    %v1266 = vadd.f32 %v1139, %v1265
    %1267 = vmatmul.f32.gmra.mxu0 %v1207
    %v1268 = vpop.f32.mrf.mxu0
    %v1269 = vadd.f32 %v1144, %v1268
    %1270 = vmatmul.f32.gmra.mxu0 %v1210
    %v1271 = vpop.f32.mrf.mxu0
    %v1272 = vadd.f32 %v1149, %v1271
    %1273 = vmatmul.f32.gmra.mxu0 %v1213
    %v1274 = vpop.f32.mrf.mxu0
    %v1275 = vadd.f32 %v1154, %v1274
    %1276 = vmatmul.f32.gmra.mxu0 %v1216
    %v1277 = vpop.f32.mrf.mxu0
    %v1278 = vadd.f32 %v1159, %v1277
    %1279 = vmatmul.f32.gmra.mxu0 %v1219
    %v1280 = vpop.f32.mrf.mxu0
    %v1281 = vadd.f32 %v1164, %v1280
    %1282 = vmatmul.f32.gmra.mxu0 %v1222
    %v1283 = vpop.f32.mrf.mxu0
    %v1284 = vadd.f32 %v1169, %v1283
    %1285 = vmatmul.f32.gmra.mxu0 %v1225
    %v1286 = vpop.f32.mrf.mxu0
    %v1287 = vadd.f32 %v1174, %v1286
    %1288 = vmatmul.f32.gmra.mxu0 %v1228
    %v1289 = vpop.f32.mrf.mxu0
    %v1290 = vadd.f32 %v1179, %v1289
    %1291 = vmatmul.f32.gmra.mxu0 %v1231
    %v1292 = vpop.f32.mrf.mxu0
    %v1293 = vadd.f32 %v1184, %v1292
    %1294 = vmatmul.f32.gmra.mxu0 %v1234
    %v1295 = vpop.f32.mrf.mxu0
    %v1296 = vadd.f32 %v1189, %v1295
    %1297 = vdwg.mxu0
    %v1298 = vld [vmem:[%s1] sm:$0xf]
    %v1299 = vld [vmem:[%s19] sm:$0xff]
    %v1300 = vld [vmem:[%s19 + $0x8] sm:$0xff]
    %v1301 = vld [vmem:[%s19 + $0x10] sm:$0xff]
    %v1302 = vld [vmem:[%s19 + $0x18] sm:$0xff]
    %vm1303 = vcmask 31744
    %v1305 = vsel %vm1303, %v1299, 0
    %v1308 = vsel %vm1303, %v1300, 0
    %v1311 = vsel %vm1303, %v1301, 0
    %v1314 = vsel %vm1303, %v1302, 0
    %vm1316 = vcmask 1043456
    %v1318 = vsel %vm1316, %v1298, 0
    %1320 = vmatpush.msra.mxu0 0.0
    %1321 = vmatpush.msra.mxu0 0.0
    %1322 = vmatpush.msra.mxu0 0.0
    %1323 = vmatpush.msra.mxu0 0.0
    %1324 = vmatpush.msra.mxu0 0.0
    %1325 = vmatpush.msra.mxu0 0.0
    %1326 = vmatpush.msra.mxu0 0.0
    %1327 = vmatpush.msra.mxu0 0.0
    %1328 = vmatpush.msra.mxu0 0.0
    %1329 = vmatpush.msra.mxu0 0.0
    %1330 = vmatpush.msra.mxu0 0.0
    %1331 = vmatpush.msra.mxu0 0.0
    %1332 = vmatpush.msra.mxu0 0.0
    %1333 = vmatpush.msra.mxu0 0.0
    %1334 = vmatpush.msra.mxu0 0.0
    %1335 = vmatpush.msra.mxu0 %v1318
    %1336 = vmatmul.f32.gmra.mxu0 %v1305
    %v1337 = vpop.f32.mrf.mxu0
    %v1338 = vadd.f32 %v1254, %v1337
    %1339 = vmatmul.f32.gmra.mxu0 %v1308
    %v1340 = vpop.f32.mrf.mxu0
    %v1341 = vadd.f32 %v1257, %v1340
    %1342 = vmatmul.f32.gmra.mxu0 %v1311
    %v1343 = vpop.f32.mrf.mxu0
    %v1344 = vadd.f32 %v1260, %v1343
    %1345 = vmatmul.f32.gmra.mxu0 %v1314
    %v1346 = vpop.f32.mrf.mxu0
    %v1347 = vadd.f32 %v1263, %v1346
    %1348 = vdwg.mxu0
    %v1349 = vld [vmem:[%s21] sm:$0xff]
    %v1350 = vld [vmem:[%s21 + $0x8] sm:$0xff]
    %v1351 = vld [vmem:[%s21 + $0x10] sm:$0xff]
    %v1352 = vld [vmem:[%s21 + $0x18] sm:$0xff]
    %v1353 = vld [vmem:[%s23] sm:$0xff]
    %v1354 = vld [vmem:[%s23 + $0x8] sm:$0xff]
    %v1355 = vld [vmem:[%s23 + $0x10] sm:$0xff]
    %v1356 = vld [vmem:[%s23 + $0x18] sm:$0xff]
    %vm1357 = vcmask 64512
    %v1358 = vsel %vm1357, %v1338, 0.0
    %v1359 = vsel %vm1357, %v1341, 0.0
    %v1360 = vadd.f32 %v1358, %v1359
    %v1361 = vsel %vm1357, %v1344, 0.0
    %v1362 = vadd.f32 %v1360, %v1361
    %v1363 = vsel %vm1357, %v1347, 0.0
    %v1364 = vadd.f32 %v1362, %v1363
    %v1365 = vrot.slane %v1364, 4
    %v1366 = vadd.f32 %v1364, %v1365
    %v1367 = vrot.slane %v1366, 2
    %v1368 = vadd.f32 %v1366, %v1367
    %v1369 = vrot.slane %v1368, 1
    %v1370 = vadd.f32 %v1368, %v1369
    %v1371 = vrcp.pop 32.0
    %v1372 = vmul.f32 32.0, %v1371
    %v1373 = vsub.f32 1.0, %v1372
    %v1374 = vmul.f32 %v1371, %v1373
    %v1375 = vadd.f32 %v1371, %v1374
    %vm1376 = vweird.f32 %v1371
    %v1377 = vsel %vm1376, %v1371, %v1375
    %v1378 = vmul.f32 %v1370, %v1377
    %v1379 = vsub.f32 %v1338, %v1378
    %v1380 = vsub.f32 %v1341, %v1378
    %v1381 = vsub.f32 %v1344, %v1378
    %v1382 = vsub.f32 %v1347, %v1378
    %v1383 = vmul.f32 %v1379, %v1379
    %v1384 = vmul.f32 %v1380, %v1380
    %v1385 = vmul.f32 %v1381, %v1381
    %v1386 = vmul.f32 %v1382, %v1382
    %v1387 = vsel %vm1357, %v1383, 0.0
    %v1388 = vsel %vm1357, %v1384, 0.0
    %v1389 = vadd.f32 %v1387, %v1388
    %v1390 = vsel %vm1357, %v1385, 0.0
    %v1391 = vadd.f32 %v1389, %v1390
    %v1392 = vsel %vm1357, %v1386, 0.0
    %v1393 = vadd.f32 %v1391, %v1392
    %v1394 = vrot.slane %v1393, 4
    %v1395 = vadd.f32 %v1393, %v1394
    %v1396 = vrot.slane %v1395, 2
    %v1397 = vadd.f32 %v1395, %v1396
    %v1398 = vrot.slane %v1397, 1
    %v1399 = vadd.f32 %v1397, %v1398
    %v1400 = vmul.f32 %v1399, %v1377
    %v1401 = vadd.f32 %v1400, 1e-05
    %v1402 = vrsqrt.pop %v1401
    %v1403 = vmul.f32 %v1402, %v1401
    %v1404 = vmul.f32 %v1403, %v1402
    %v1405 = vmul.f32 0.5, %v1404
    %v1406 = vsub.f32 1.5, %v1405
    %v1407 = vmul.f32 %v1402, %v1406
    %vm1408 = vweird.f32 %v1401
    %vm1409 = vweird.f32 %v1402
    %vm1410 = vmor %vm1408, %vm1409
    %v1411 = vsel %vm1410, %v1402, %v1407
    %v1412 = vmul.f32 %v1379, %v1411
    %v1413 = vmul.f32 %v1380, %v1411
    %v1414 = vmul.f32 %v1381, %v1411
    %v1415 = vmul.f32 %v1382, %v1411
    %1417 = vset.pattern.permute.xlu0 0
    %1418 = vperm.xlu0 %1417, %v1349
    %v1419 = vpop.permute.xlu0 %1418
    %1422 = vset.pattern.permute.xlu0 0
    %1423 = vperm.xlu0 %1422, %v1350
    %v1424 = vpop.permute.xlu0 %1423
    %1427 = vset.pattern.permute.xlu0 0
    %1428 = vperm.xlu0 %1427, %v1351
    %v1429 = vpop.permute.xlu0 %1428
    %1432 = vset.pattern.permute.xlu0 0
    %1433 = vperm.xlu0 %1432, %v1352
    %v1434 = vpop.permute.xlu0 %1433
    %v1436 = vmul.f32 %v1412, %v1419
    %v1437 = vmul.f32 %v1413, %v1424
    %v1438 = vmul.f32 %v1414, %v1429
    %v1439 = vmul.f32 %v1415, %v1434
    %1441 = vset.pattern.permute.xlu0 0
    %1442 = vperm.xlu0 %1441, %v1353
    %v1443 = vpop.permute.xlu0 %1442
    %1446 = vset.pattern.permute.xlu0 0
    %1447 = vperm.xlu0 %1446, %v1354
    %v1448 = vpop.permute.xlu0 %1447
    %1451 = vset.pattern.permute.xlu0 0
    %1452 = vperm.xlu0 %1451, %v1355
    %v1453 = vpop.permute.xlu0 %1452
    %1456 = vset.pattern.permute.xlu0 0
    %1457 = vperm.xlu0 %1456, %v1356
    %v1458 = vpop.permute.xlu0 %1457
    %v1460 = vadd.f32 %v1436, %v1443
    %v1461 = vadd.f32 %v1437, %v1448
    %v1462 = vadd.f32 %v1438, %v1453
    %v1463 = vadd.f32 %v1439, %v1458
    %v1464 = vxor.u32 %v1460, 2147483648
    %v1465 = vxor.u32 %v1461, 2147483648
    %v1466 = vxor.u32 %v1462, 2147483648
    %v1467 = vxor.u32 %v1463, 2147483648
    %v1468 = vmul.f32 %v1464, 1.442695
    %v1469 = vpow.pop %v1468
    %v1470 = vmul.f32 %v1465, 1.442695
    %v1471 = vpow.pop %v1470
    %v1472 = vmul.f32 %v1466, 1.442695
    %v1473 = vpow.pop %v1472
    %v1474 = vmul.f32 %v1467, 1.442695
    %v1475 = vpow.pop %v1474
    %v1476 = vadd.f32 %v1469, 1.0
    %v1477 = vadd.f32 %v1471, 1.0
    %v1478 = vadd.f32 %v1473, 1.0
    %v1479 = vadd.f32 %v1475, 1.0
    %v1480 = vrcp.pop %v1476
    %v1481 = vmul.f32 %v1476, %v1480
    %v1482 = vsub.f32 1.0, %v1481
    %v1483 = vmul.f32 %v1480, %v1482
    %v1484 = vadd.f32 %v1480, %v1483
    %vm1485 = vweird.f32 %v1476
    %vm1486 = vweird.f32 %v1480
    %vm1487 = vmor %vm1485, %vm1486
    %v1488 = vsel %vm1487, %v1480, %v1484
    %v1489 = vand.u32 2147483647, %v1476
    %vm1490 = vcmp.eq.f32.partialorder %v1489, 8.507059e+37
    %v1491 = vand.u32 %v1476, 2147483648
    %v1492 = vor.u32 1.1754944e-38, %v1491
    %v1493 = vsel %vm1490, %v1492, %v1488
    %v1494 = vmul.f32 1.0, %v1493
    %v1495 = vrcp.pop %v1477
    %v1496 = vmul.f32 %v1477, %v1495
    %v1497 = vsub.f32 1.0, %v1496
    %v1498 = vmul.f32 %v1495, %v1497
    %v1499 = vadd.f32 %v1495, %v1498
    %vm1500 = vweird.f32 %v1477
    %vm1501 = vweird.f32 %v1495
    %vm1502 = vmor %vm1500, %vm1501
    %v1503 = vsel %vm1502, %v1495, %v1499
    %v1504 = vand.u32 2147483647, %v1477
    %vm1505 = vcmp.eq.f32.partialorder %v1504, 8.507059e+37
    %v1506 = vand.u32 %v1477, 2147483648
    %v1507 = vor.u32 1.1754944e-38, %v1506
    %v1508 = vsel %vm1505, %v1507, %v1503
    %v1509 = vmul.f32 1.0, %v1508
    %v1510 = vrcp.pop %v1478
    %v1511 = vmul.f32 %v1478, %v1510
    %v1512 = vsub.f32 1.0, %v1511
    %v1513 = vmul.f32 %v1510, %v1512
    %v1514 = vadd.f32 %v1510, %v1513
    %vm1515 = vweird.f32 %v1478
    %vm1516 = vweird.f32 %v1510
    %vm1517 = vmor %vm1515, %vm1516
    %v1518 = vsel %vm1517, %v1510, %v1514
    %v1519 = vand.u32 2147483647, %v1478
    %vm1520 = vcmp.eq.f32.partialorder %v1519, 8.507059e+37
    %v1521 = vand.u32 %v1478, 2147483648
    %v1522 = vor.u32 1.1754944e-38, %v1521
    %v1523 = vsel %vm1520, %v1522, %v1518
    %v1524 = vmul.f32 1.0, %v1523
    %v1525 = vrcp.pop %v1479
    %v1526 = vmul.f32 %v1479, %v1525
    %v1527 = vsub.f32 1.0, %v1526
    %v1528 = vmul.f32 %v1525, %v1527
    %v1529 = vadd.f32 %v1525, %v1528
    %vm1530 = vweird.f32 %v1479
    %vm1531 = vweird.f32 %v1525
    %vm1532 = vmor %vm1530, %vm1531
    %v1533 = vsel %vm1532, %v1525, %v1529
    %v1534 = vand.u32 2147483647, %v1479
    %vm1535 = vcmp.eq.f32.partialorder %v1534, 8.507059e+37
    %v1536 = vand.u32 %v1479, 2147483648
    %v1537 = vor.u32 1.1754944e-38, %v1536
    %v1538 = vsel %vm1535, %v1537, %v1533
    %v1539 = vmul.f32 1.0, %v1538
    %v1540 = vmul.f32 %v1460, %v1494
    %v1541 = vmul.f32 %v1461, %v1509
    %v1542 = vmul.f32 %v1462, %v1524
    %v1543 = vmul.f32 %v1463, %v1539
    %v1544 = vld [vmem:[%s25] sm:$0xff]
    %v1545 = vld [vmem:[%s25 + $0x8] sm:$0xff]
    %v1547 = vsel %vm815, %v1544, 0
    %v1550 = vsel %vm815, %v1545, 0
    %1552 = vmatpush.msra.mxu0 0.0
    %1553 = vmatpush.msra.mxu0 0.0
    %1554 = vmatpush.msra.mxu0 0.0
    %1555 = vmatpush.msra.mxu0 0.0
    %1556 = vmatpush.msra.mxu0 0.0
    %1557 = vmatpush.msra.mxu0 0.0
    %1558 = vmatpush.msra.mxu0 0.0
    %1559 = vmatpush.msra.mxu0 0.0
    %1560 = vmatpush.msra.mxu0 0.0
    %1561 = vmatpush.msra.mxu0 0.0
    %1562 = vmatpush.msra.mxu0 0.0
    %1563 = vmatpush.msra.mxu0 0.0
    %1564 = vmatpush.msra.mxu0 %v1543
    %1565 = vmatpush.msra.mxu0 %v1542
    %1566 = vmatpush.msra.mxu0 %v1541
    %1567 = vmatpush.msra.mxu0 %v1540
    %1568 = vmatmul.f32.gmra.mxu0 %v1547
    %v1569 = vpop.f32.mrf.mxu0
    %v1570 = vadd.f32 %v1266, %v1569
    %1571 = vmatmul.f32.gmra.mxu0 %v1550
    %v1572 = vpop.f32.mrf.mxu0
    %v1573 = vadd.f32 %v1269, %v1572
    %1574 = vdwg.mxu0
    %v1575 = vld [vmem:[%s27] sm:$0xff]
    %v1576 = vld [vmem:[%s27 + $0x8] sm:$0xff]
    %v1577 = vld [vmem:[%s29] sm:$0xff]
    %v1578 = vld [vmem:[%s29 + $0x8] sm:$0xff]
    %v1579 = vsel %vm1357, %v1570, 0.0
    %v1580 = vsel %vm1357, %v1573, 0.0
    %v1581 = vadd.f32 %v1579, %v1580
    %v1582 = vrot.slane %v1581, 4
    %v1583 = vadd.f32 %v1581, %v1582
    %v1584 = vrot.slane %v1583, 2
    %v1585 = vadd.f32 %v1583, %v1584
    %v1586 = vrot.slane %v1585, 1
    %v1587 = vadd.f32 %v1585, %v1586
    %v1588 = vrcp.pop 16.0
    %v1589 = vmul.f32 16.0, %v1588
    %v1590 = vsub.f32 1.0, %v1589
    %v1591 = vmul.f32 %v1588, %v1590
    %v1592 = vadd.f32 %v1588, %v1591
    %vm1593 = vweird.f32 %v1588
    %v1594 = vsel %vm1593, %v1588, %v1592
    %v1595 = vmul.f32 %v1587, %v1594
    %v1596 = vsub.f32 %v1570, %v1595
    %v1597 = vsub.f32 %v1573, %v1595
    %v1598 = vmul.f32 %v1596, %v1596
    %v1599 = vmul.f32 %v1597, %v1597
    %v1600 = vsel %vm1357, %v1598, 0.0
    %v1601 = vsel %vm1357, %v1599, 0.0
    %v1602 = vadd.f32 %v1600, %v1601
    %v1603 = vrot.slane %v1602, 4
    %v1604 = vadd.f32 %v1602, %v1603
    %v1605 = vrot.slane %v1604, 2
    %v1606 = vadd.f32 %v1604, %v1605
    %v1607 = vrot.slane %v1606, 1
    %v1608 = vadd.f32 %v1606, %v1607
    %v1609 = vmul.f32 %v1608, %v1594
    %v1610 = vadd.f32 %v1609, 1e-05
    %v1611 = vrsqrt.pop %v1610
    %v1612 = vmul.f32 %v1611, %v1610
    %v1613 = vmul.f32 %v1612, %v1611
    %v1614 = vmul.f32 0.5, %v1613
    %v1615 = vsub.f32 1.5, %v1614
    %v1616 = vmul.f32 %v1611, %v1615
    %vm1617 = vweird.f32 %v1610
    %vm1618 = vweird.f32 %v1611
    %vm1619 = vmor %vm1617, %vm1618
    %v1620 = vsel %vm1619, %v1611, %v1616
    %v1621 = vmul.f32 %v1596, %v1620
    %v1622 = vmul.f32 %v1597, %v1620
    %1624 = vset.pattern.permute.xlu0 0
    %1625 = vperm.xlu0 %1624, %v1575
    %v1626 = vpop.permute.xlu0 %1625
    %1629 = vset.pattern.permute.xlu0 0
    %1630 = vperm.xlu0 %1629, %v1576
    %v1631 = vpop.permute.xlu0 %1630
    %v1633 = vmul.f32 %v1621, %v1626
    %v1634 = vmul.f32 %v1622, %v1631
    %1636 = vset.pattern.permute.xlu0 0
    %1637 = vperm.xlu0 %1636, %v1577
    %v1638 = vpop.permute.xlu0 %1637
    %1641 = vset.pattern.permute.xlu0 0
    %1642 = vperm.xlu0 %1641, %v1578
    %v1643 = vpop.permute.xlu0 %1642
    %v1645 = vadd.f32 %v1633, %v1638
    %v1646 = vadd.f32 %v1634, %v1643
    %v1647 = vxor.u32 %v1645, 2147483648
    %v1648 = vxor.u32 %v1646, 2147483648
    %v1649 = vmul.f32 %v1647, 1.442695
    %v1650 = vpow.pop %v1649
    %v1651 = vmul.f32 %v1648, 1.442695
    %v1652 = vpow.pop %v1651
    %v1653 = vadd.f32 %v1650, 1.0
    %v1654 = vadd.f32 %v1652, 1.0
    %v1655 = vrcp.pop %v1653
    %v1656 = vmul.f32 %v1653, %v1655
    %v1657 = vsub.f32 1.0, %v1656
    %v1658 = vmul.f32 %v1655, %v1657
    %v1659 = vadd.f32 %v1655, %v1658
    %vm1660 = vweird.f32 %v1653
    %vm1661 = vweird.f32 %v1655
    %vm1662 = vmor %vm1660, %vm1661
    %v1663 = vsel %vm1662, %v1655, %v1659
    %v1664 = vand.u32 2147483647, %v1653
    %vm1665 = vcmp.eq.f32.partialorder %v1664, 8.507059e+37
    %v1666 = vand.u32 %v1653, 2147483648
    %v1667 = vor.u32 1.1754944e-38, %v1666
    %v1668 = vsel %vm1665, %v1667, %v1663
    %v1669 = vmul.f32 1.0, %v1668
    %v1670 = vrcp.pop %v1654
    %v1671 = vmul.f32 %v1654, %v1670
    %v1672 = vsub.f32 1.0, %v1671
    %v1673 = vmul.f32 %v1670, %v1672
    %v1674 = vadd.f32 %v1670, %v1673
    %vm1675 = vweird.f32 %v1654
    %vm1676 = vweird.f32 %v1670
    %vm1677 = vmor %vm1675, %vm1676
    %v1678 = vsel %vm1677, %v1670, %v1674
    %v1679 = vand.u32 2147483647, %v1654
    %vm1680 = vcmp.eq.f32.partialorder %v1679, 8.507059e+37
    %v1681 = vand.u32 %v1654, 2147483648
    %v1682 = vor.u32 1.1754944e-38, %v1681
    %v1683 = vsel %vm1680, %v1682, %v1678
    %v1684 = vmul.f32 1.0, %v1683
    %v1685 = vmul.f32 %v1645, %v1669
    %v1686 = vmul.f32 %v1646, %v1684
    %v1687 = vld [vmem:[%s31] sm:$0xff]
    %vm1688 = vcmask 130048
    %v1690 = vsel %vm1688, %v1687, 0
    %1692 = vmatpush.msra.mxu0 0.0
    %1693 = vmatpush.msra.mxu0 0.0
    %1694 = vmatpush.msra.mxu0 0.0
    %1695 = vmatpush.msra.mxu0 0.0
    %1696 = vmatpush.msra.mxu0 0.0
    %1697 = vmatpush.msra.mxu0 0.0
    %1698 = vmatpush.msra.mxu0 0.0
    %1699 = vmatpush.msra.mxu0 0.0
    %1700 = vmatpush.msra.mxu0 0.0
    %1701 = vmatpush.msra.mxu0 0.0
    %1702 = vmatpush.msra.mxu0 0.0
    %1703 = vmatpush.msra.mxu0 0.0
    %1704 = vmatpush.msra.mxu0 0.0
    %1705 = vmatpush.msra.mxu0 0.0
    %1706 = vmatpush.msra.mxu0 %v1686
    %1707 = vmatpush.msra.mxu0 %v1685
    %1708 = vmatmul.f32.gmra.mxu0 %v1690
    %v1709 = vpop.f32.mrf.mxu0
    %v1710 = vadd.f32 %v1272, %v1709
    %1711 = vdwg.mxu0
    %v1712 = vld [vmem:[%s33] sm:$0xff]
    %v1713 = vld [vmem:[%s35] sm:$0xff]
    %v1714 = vsel %vm1357, %v1710, 0.0
    %v1715 = vrot.slane %v1714, 4
    %v1716 = vadd.f32 %v1714, %v1715
    %v1717 = vrot.slane %v1716, 2
    %v1718 = vadd.f32 %v1716, %v1717
    %v1719 = vrot.slane %v1718, 1
    %v1720 = vadd.f32 %v1718, %v1719
    %v1721 = vrcp.pop 8.0
    %v1722 = vmul.f32 8.0, %v1721
    %v1723 = vsub.f32 1.0, %v1722
    %v1724 = vmul.f32 %v1721, %v1723
    %v1725 = vadd.f32 %v1721, %v1724
    %vm1726 = vweird.f32 %v1721
    %v1727 = vsel %vm1726, %v1721, %v1725
    %v1728 = vmul.f32 %v1720, %v1727
    %v1729 = vsub.f32 %v1710, %v1728
    %v1730 = vmul.f32 %v1729, %v1729
    %v1731 = vsel %vm1357, %v1730, 0.0
    %v1732 = vrot.slane %v1731, 4
    %v1733 = vadd.f32 %v1731, %v1732
    %v1734 = vrot.slane %v1733, 2
    %v1735 = vadd.f32 %v1733, %v1734
    %v1736 = vrot.slane %v1735, 1
    %v1737 = vadd.f32 %v1735, %v1736
    %v1738 = vmul.f32 %v1737, %v1727
    %v1739 = vadd.f32 %v1738, 1e-05
    %v1740 = vrsqrt.pop %v1739
    %v1741 = vmul.f32 %v1740, %v1739
    %v1742 = vmul.f32 %v1741, %v1740
    %v1743 = vmul.f32 0.5, %v1742
    %v1744 = vsub.f32 1.5, %v1743
    %v1745 = vmul.f32 %v1740, %v1744
    %vm1746 = vweird.f32 %v1739
    %vm1747 = vweird.f32 %v1740
    %vm1748 = vmor %vm1746, %vm1747
    %v1749 = vsel %vm1748, %v1740, %v1745
    %v1750 = vmul.f32 %v1729, %v1749
    %1752 = vset.pattern.permute.xlu0 0
    %1753 = vperm.xlu0 %1752, %v1712
    %v1754 = vpop.permute.xlu0 %1753
    %v1756 = vmul.f32 %v1750, %v1754
    %1758 = vset.pattern.permute.xlu0 0
    %1759 = vperm.xlu0 %1758, %v1713
    %v1760 = vpop.permute.xlu0 %1759
    %v1762 = vadd.f32 %v1756, %v1760
    %v1763 = vxor.u32 %v1762, 2147483648
    %v1764 = vmul.f32 %v1763, 1.442695
    %v1765 = vpow.pop %v1764
    %v1766 = vadd.f32 %v1765, 1.0
    %v1767 = vrcp.pop %v1766
    %v1768 = vmul.f32 %v1766, %v1767
    %v1769 = vsub.f32 1.0, %v1768
    %v1770 = vmul.f32 %v1767, %v1769
    %v1771 = vadd.f32 %v1767, %v1770
    %vm1772 = vweird.f32 %v1766
    %vm1773 = vweird.f32 %v1767
    %vm1774 = vmor %vm1772, %vm1773
    %v1775 = vsel %vm1774, %v1767, %v1771
    %v1776 = vand.u32 2147483647, %v1766
    %vm1777 = vcmp.eq.f32.partialorder %v1776, 8.507059e+37
    %v1778 = vand.u32 %v1766, 2147483648
    %v1779 = vor.u32 1.1754944e-38, %v1778
    %v1780 = vsel %vm1777, %v1779, %v1775
    %v1781 = vmul.f32 1.0, %v1780
    %v1782 = vmul.f32 %v1762, %v1781
    %v1783 = vld [vmem:[%s37] sm:$0xff]
    %v1785 = vsel %vm1357, %v1783, 0
    %1787 = vmatpush.msra.mxu0 0.0
    %1788 = vmatpush.msra.mxu0 0.0
    %1789 = vmatpush.msra.mxu0 0.0
    %1790 = vmatpush.msra.mxu0 0.0
    %1791 = vmatpush.msra.mxu0 0.0
    %1792 = vmatpush.msra.mxu0 0.0
    %1793 = vmatpush.msra.mxu0 0.0
    %1794 = vmatpush.msra.mxu0 0.0
    %1795 = vmatpush.msra.mxu0 0.0
    %1796 = vmatpush.msra.mxu0 0.0
    %1797 = vmatpush.msra.mxu0 0.0
    %1798 = vmatpush.msra.mxu0 0.0
    %1799 = vmatpush.msra.mxu0 0.0
    %1800 = vmatpush.msra.mxu0 0.0
    %1801 = vmatpush.msra.mxu0 0.0
    %1802 = vmatpush.msra.mxu0 %v1782
    %1803 = vmatmul.f32.gmra.mxu0 %v1785
    %v1804 = vpop.f32.mrf.mxu0
    %v1805 = vadd.f32 %v1275, %v1804
    %1806 = vdwg.mxu0
    %v1807 = vld [vmem:[%s39] sm:$0xff]
    %v1808 = vld [vmem:[%s41] sm:$0xff]
    %v1809 = vsel %vm1357, %v1805, 0.0
    %v1810 = vrot.slane %v1809, 4
    %v1811 = vadd.f32 %v1809, %v1810
    %v1812 = vrot.slane %v1811, 2
    %v1813 = vadd.f32 %v1811, %v1812
    %v1814 = vrot.slane %v1813, 1
    %v1815 = vadd.f32 %v1813, %v1814
    %v1816 = vmul.f32 %v1815, %v1727
    %v1817 = vsub.f32 %v1805, %v1816
    %v1818 = vmul.f32 %v1817, %v1817
    %v1819 = vsel %vm1357, %v1818, 0.0
    %v1820 = vrot.slane %v1819, 4
    %v1821 = vadd.f32 %v1819, %v1820
    %v1822 = vrot.slane %v1821, 2
    %v1823 = vadd.f32 %v1821, %v1822
    %v1824 = vrot.slane %v1823, 1
    %v1825 = vadd.f32 %v1823, %v1824
    %v1826 = vmul.f32 %v1825, %v1727
    %v1827 = vadd.f32 %v1826, 1e-05
    %v1828 = vrsqrt.pop %v1827
    %v1829 = vmul.f32 %v1828, %v1827
    %v1830 = vmul.f32 %v1829, %v1828
    %v1831 = vmul.f32 0.5, %v1830
    %v1832 = vsub.f32 1.5, %v1831
    %v1833 = vmul.f32 %v1828, %v1832
    %vm1834 = vweird.f32 %v1827
    %vm1835 = vweird.f32 %v1828
    %vm1836 = vmor %vm1834, %vm1835
    %v1837 = vsel %vm1836, %v1828, %v1833
    %v1838 = vmul.f32 %v1817, %v1837
    %1840 = vset.pattern.permute.xlu0 0
    %1841 = vperm.xlu0 %1840, %v1807
    %v1842 = vpop.permute.xlu0 %1841
    %v1844 = vmul.f32 %v1838, %v1842
    %1846 = vset.pattern.permute.xlu0 0
    %1847 = vperm.xlu0 %1846, %v1808
    %v1848 = vpop.permute.xlu0 %1847
    %v1850 = vadd.f32 %v1844, %v1848
    %v1851 = vxor.u32 %v1850, 2147483648
    %v1852 = vmul.f32 %v1851, 1.442695
    %v1853 = vpow.pop %v1852
    %v1854 = vadd.f32 %v1853, 1.0
    %v1855 = vrcp.pop %v1854
    %v1856 = vmul.f32 %v1854, %v1855
    %v1857 = vsub.f32 1.0, %v1856
    %v1858 = vmul.f32 %v1855, %v1857
    %v1859 = vadd.f32 %v1855, %v1858
    %vm1860 = vweird.f32 %v1854
    %vm1861 = vweird.f32 %v1855
    %vm1862 = vmor %vm1860, %vm1861
    %v1863 = vsel %vm1862, %v1855, %v1859
    %v1864 = vand.u32 2147483647, %v1854
    %vm1865 = vcmp.eq.f32.partialorder %v1864, 8.507059e+37
    %v1866 = vand.u32 %v1854, 2147483648
    %v1867 = vor.u32 1.1754944e-38, %v1866
    %v1868 = vsel %vm1865, %v1867, %v1863
    %v1869 = vmul.f32 1.0, %v1868
    %v1870 = vmul.f32 %v1850, %v1869
    %v1871 = vld [vmem:[%s43] sm:$0xff]
    %v1873 = vsel %vm1357, %v1871, 0
    %1875 = vmatpush.msra.mxu0 0.0
    %1876 = vmatpush.msra.mxu0 0.0
    %1877 = vmatpush.msra.mxu0 0.0
    %1878 = vmatpush.msra.mxu0 0.0
    %1879 = vmatpush.msra.mxu0 0.0
    %1880 = vmatpush.msra.mxu0 0.0
    %1881 = vmatpush.msra.mxu0 0.0
    %1882 = vmatpush.msra.mxu0 0.0
    %1883 = vmatpush.msra.mxu0 0.0
    %1884 = vmatpush.msra.mxu0 0.0
    %1885 = vmatpush.msra.mxu0 0.0
    %1886 = vmatpush.msra.mxu0 0.0
    %1887 = vmatpush.msra.mxu0 0.0
    %1888 = vmatpush.msra.mxu0 0.0
    %1889 = vmatpush.msra.mxu0 0.0
    %1890 = vmatpush.msra.mxu0 %v1870
    %1891 = vmatmul.f32.gmra.mxu0 %v1873
    %v1892 = vpop.f32.mrf.mxu0
    %v1893 = vadd.f32 %v1278, %v1892
    %1894 = vdwg.mxu0
    %v1895 = vld [vmem:[%s45] sm:$0xff]
    %v1896 = vld [vmem:[%s47] sm:$0xff]
    %v1897 = vsel %vm1357, %v1893, 0.0
    %v1898 = vrot.slane %v1897, 4
    %v1899 = vadd.f32 %v1897, %v1898
    %v1900 = vrot.slane %v1899, 2
    %v1901 = vadd.f32 %v1899, %v1900
    %v1902 = vrot.slane %v1901, 1
    %v1903 = vadd.f32 %v1901, %v1902
    %v1904 = vmul.f32 %v1903, %v1727
    %v1905 = vsub.f32 %v1893, %v1904
    %v1906 = vmul.f32 %v1905, %v1905
    %v1907 = vsel %vm1357, %v1906, 0.0
    %v1908 = vrot.slane %v1907, 4
    %v1909 = vadd.f32 %v1907, %v1908
    %v1910 = vrot.slane %v1909, 2
    %v1911 = vadd.f32 %v1909, %v1910
    %v1912 = vrot.slane %v1911, 1
    %v1913 = vadd.f32 %v1911, %v1912
    %v1914 = vmul.f32 %v1913, %v1727
    %v1915 = vadd.f32 %v1914, 1e-05
    %v1916 = vrsqrt.pop %v1915
    %v1917 = vmul.f32 %v1916, %v1915
    %v1918 = vmul.f32 %v1917, %v1916
    %v1919 = vmul.f32 0.5, %v1918
    %v1920 = vsub.f32 1.5, %v1919
    %v1921 = vmul.f32 %v1916, %v1920
    %vm1922 = vweird.f32 %v1915
    %vm1923 = vweird.f32 %v1916
    %vm1924 = vmor %vm1922, %vm1923
    %v1925 = vsel %vm1924, %v1916, %v1921
    %v1926 = vmul.f32 %v1905, %v1925
    %1928 = vset.pattern.permute.xlu0 0
    %1929 = vperm.xlu0 %1928, %v1895
    %v1930 = vpop.permute.xlu0 %1929
    %v1932 = vmul.f32 %v1926, %v1930
    %1934 = vset.pattern.permute.xlu0 0
    %1935 = vperm.xlu0 %1934, %v1896
    %v1936 = vpop.permute.xlu0 %1935
    %v1938 = vadd.f32 %v1932, %v1936
    %v1939 = vxor.u32 %v1938, 2147483648
    %v1940 = vmul.f32 %v1939, 1.442695
    %v1941 = vpow.pop %v1940
    %v1942 = vadd.f32 %v1941, 1.0
    %v1943 = vrcp.pop %v1942
    %v1944 = vmul.f32 %v1942, %v1943
    %v1945 = vsub.f32 1.0, %v1944
    %v1946 = vmul.f32 %v1943, %v1945
    %v1947 = vadd.f32 %v1943, %v1946
    %vm1948 = vweird.f32 %v1942
    %vm1949 = vweird.f32 %v1943
    %vm1950 = vmor %vm1948, %vm1949
    %v1951 = vsel %vm1950, %v1943, %v1947
    %v1952 = vand.u32 2147483647, %v1942
    %vm1953 = vcmp.eq.f32.partialorder %v1952, 8.507059e+37
    %v1954 = vand.u32 %v1942, 2147483648
    %v1955 = vor.u32 1.1754944e-38, %v1954
    %v1956 = vsel %vm1953, %v1955, %v1951
    %v1957 = vmul.f32 1.0, %v1956
    %v1958 = vmul.f32 %v1938, %v1957
    %v1959 = vadd.f32 %v1958, %v1782
    %v1960 = vld [vmem:[%s49] sm:$0xff]
    %v1961 = vld [vmem:[%s49 + $0x8] sm:$0xff]
    %v1963 = vsel %vm1357, %v1960, 0
    %v1966 = vsel %vm1357, %v1961, 0
    %1968 = vmatpush.msra.mxu0 0.0
    %1969 = vmatpush.msra.mxu0 0.0
    %1970 = vmatpush.msra.mxu0 0.0
    %1971 = vmatpush.msra.mxu0 0.0
    %1972 = vmatpush.msra.mxu0 0.0
    %1973 = vmatpush.msra.mxu0 0.0
    %1974 = vmatpush.msra.mxu0 0.0
    %1975 = vmatpush.msra.mxu0 0.0
    %1976 = vmatpush.msra.mxu0 0.0
    %1977 = vmatpush.msra.mxu0 0.0
    %1978 = vmatpush.msra.mxu0 0.0
    %1979 = vmatpush.msra.mxu0 0.0
    %1980 = vmatpush.msra.mxu0 0.0
    %1981 = vmatpush.msra.mxu0 0.0
    %1982 = vmatpush.msra.mxu0 0.0
    %1983 = vmatpush.msra.mxu0 %v1959
    %1984 = vmatmul.f32.gmra.mxu0 %v1963
    %v1985 = vpop.f32.mrf.mxu0
    %v1986 = vadd.f32 %v1281, %v1985
    %1987 = vmatmul.f32.gmra.mxu0 %v1966
    %v1988 = vpop.f32.mrf.mxu0
    %v1989 = vadd.f32 %v1284, %v1988
    %1990 = vdwg.mxu0
    %v1991 = vld [vmem:[%s51] sm:$0xff]
    %v1992 = vld [vmem:[%s51 + $0x8] sm:$0xff]
    %v1993 = vld [vmem:[%s53] sm:$0xff]
    %v1994 = vld [vmem:[%s53 + $0x8] sm:$0xff]
    %v1995 = vsel %vm1357, %v1986, 0.0
    %v1996 = vsel %vm1357, %v1989, 0.0
    %v1997 = vadd.f32 %v1995, %v1996
    %v1998 = vrot.slane %v1997, 4
    %v1999 = vadd.f32 %v1997, %v1998
    %v2000 = vrot.slane %v1999, 2
    %v2001 = vadd.f32 %v1999, %v2000
    %v2002 = vrot.slane %v2001, 1
    %v2003 = vadd.f32 %v2001, %v2002
    %v2004 = vmul.f32 %v2003, %v1594
    %v2005 = vsub.f32 %v1986, %v2004
    %v2006 = vsub.f32 %v1989, %v2004
    %v2007 = vmul.f32 %v2005, %v2005
    %v2008 = vmul.f32 %v2006, %v2006
    %v2009 = vsel %vm1357, %v2007, 0.0
    %v2010 = vsel %vm1357, %v2008, 0.0
    %v2011 = vadd.f32 %v2009, %v2010
    %v2012 = vrot.slane %v2011, 4
    %v2013 = vadd.f32 %v2011, %v2012
    %v2014 = vrot.slane %v2013, 2
    %v2015 = vadd.f32 %v2013, %v2014
    %v2016 = vrot.slane %v2015, 1
    %v2017 = vadd.f32 %v2015, %v2016
    %v2018 = vmul.f32 %v2017, %v1594
    %v2019 = vadd.f32 %v2018, 1e-05
    %v2020 = vrsqrt.pop %v2019
    %v2021 = vmul.f32 %v2020, %v2019
    %v2022 = vmul.f32 %v2021, %v2020
    %v2023 = vmul.f32 0.5, %v2022
    %v2024 = vsub.f32 1.5, %v2023
    %v2025 = vmul.f32 %v2020, %v2024
    %vm2026 = vweird.f32 %v2019
    %vm2027 = vweird.f32 %v2020
    %vm2028 = vmor %vm2026, %vm2027
    %v2029 = vsel %vm2028, %v2020, %v2025
    %v2030 = vmul.f32 %v2005, %v2029
    %v2031 = vmul.f32 %v2006, %v2029
    %2033 = vset.pattern.permute.xlu0 0
    %2034 = vperm.xlu0 %2033, %v1991
    %v2035 = vpop.permute.xlu0 %2034
    %2038 = vset.pattern.permute.xlu0 0
    %2039 = vperm.xlu0 %2038, %v1992
    %v2040 = vpop.permute.xlu0 %2039
    %v2042 = vmul.f32 %v2030, %v2035
    %v2043 = vmul.f32 %v2031, %v2040
    %2045 = vset.pattern.permute.xlu0 0
    %2046 = vperm.xlu0 %2045, %v1993
    %v2047 = vpop.permute.xlu0 %2046
    %2050 = vset.pattern.permute.xlu0 0
    %2051 = vperm.xlu0 %2050, %v1994
    %v2052 = vpop.permute.xlu0 %2051
    %v2054 = vadd.f32 %v2042, %v2047
    %v2055 = vadd.f32 %v2043, %v2052
    %v2056 = vxor.u32 %v2054, 2147483648
    %v2057 = vxor.u32 %v2055, 2147483648
    %v2058 = vmul.f32 %v2056, 1.442695
    %v2059 = vpow.pop %v2058
    %v2060 = vmul.f32 %v2057, 1.442695
    %v2061 = vpow.pop %v2060
    %v2062 = vadd.f32 %v2059, 1.0
    %v2063 = vadd.f32 %v2061, 1.0
    %v2064 = vrcp.pop %v2062
    %v2065 = vmul.f32 %v2062, %v2064
    %v2066 = vsub.f32 1.0, %v2065
    %v2067 = vmul.f32 %v2064, %v2066
    %v2068 = vadd.f32 %v2064, %v2067
    %vm2069 = vweird.f32 %v2062
    %vm2070 = vweird.f32 %v2064
    %vm2071 = vmor %vm2069, %vm2070
    %v2072 = vsel %vm2071, %v2064, %v2068
    %v2073 = vand.u32 2147483647, %v2062
    %vm2074 = vcmp.eq.f32.partialorder %v2073, 8.507059e+37
    %v2075 = vand.u32 %v2062, 2147483648
    %v2076 = vor.u32 1.1754944e-38, %v2075
    %v2077 = vsel %vm2074, %v2076, %v2072
    %v2078 = vmul.f32 1.0, %v2077
    %v2079 = vrcp.pop %v2063
    %v2080 = vmul.f32 %v2063, %v2079
    %v2081 = vsub.f32 1.0, %v2080
    %v2082 = vmul.f32 %v2079, %v2081
    %v2083 = vadd.f32 %v2079, %v2082
    %vm2084 = vweird.f32 %v2063
    %vm2085 = vweird.f32 %v2079
    %vm2086 = vmor %vm2084, %vm2085
    %v2087 = vsel %vm2086, %v2079, %v2083
    %v2088 = vand.u32 2147483647, %v2063
    %vm2089 = vcmp.eq.f32.partialorder %v2088, 8.507059e+37
    %v2090 = vand.u32 %v2063, 2147483648
    %v2091 = vor.u32 1.1754944e-38, %v2090
    %v2092 = vsel %vm2089, %v2091, %v2087
    %v2093 = vmul.f32 1.0, %v2092
    %v2094 = vmul.f32 %v2054, %v2078
    %v2095 = vmul.f32 %v2055, %v2093
    %v2096 = vadd.f32 %v2094, %v1685
    %v2097 = vadd.f32 %v2095, %v1686
    %v2098 = vld [vmem:[%s55] sm:$0xff]
    %v2099 = vld [vmem:[%s55 + $0x8] sm:$0xff]
    %v2100 = vld [vmem:[%s55 + $0x10] sm:$0xff]
    %v2101 = vld [vmem:[%s55 + $0x18] sm:$0xff]
    %v2103 = vsel %vm1688, %v2098, 0
    %v2106 = vsel %vm1688, %v2099, 0
    %v2109 = vsel %vm1688, %v2100, 0
    %v2112 = vsel %vm1688, %v2101, 0
    %2114 = vmatpush.msra.mxu0 0.0
    %2115 = vmatpush.msra.mxu0 0.0
    %2116 = vmatpush.msra.mxu0 0.0
    %2117 = vmatpush.msra.mxu0 0.0
    %2118 = vmatpush.msra.mxu0 0.0
    %2119 = vmatpush.msra.mxu0 0.0
    %2120 = vmatpush.msra.mxu0 0.0
    %2121 = vmatpush.msra.mxu0 0.0
    %2122 = vmatpush.msra.mxu0 0.0
    %2123 = vmatpush.msra.mxu0 0.0
    %2124 = vmatpush.msra.mxu0 0.0
    %2125 = vmatpush.msra.mxu0 0.0
    %2126 = vmatpush.msra.mxu0 0.0
    %2127 = vmatpush.msra.mxu0 0.0
    %2128 = vmatpush.msra.mxu0 %v2097
    %2129 = vmatpush.msra.mxu0 %v2096
    %2130 = vmatmul.f32.gmra.mxu0 %v2103
    %v2131 = vpop.f32.mrf.mxu0
    %v2132 = vadd.f32 %v1287, %v2131
    %2133 = vmatmul.f32.gmra.mxu0 %v2106
    %v2134 = vpop.f32.mrf.mxu0
    %v2135 = vadd.f32 %v1290, %v2134
    %2136 = vmatmul.f32.gmra.mxu0 %v2109
    %v2137 = vpop.f32.mrf.mxu0
    %v2138 = vadd.f32 %v1293, %v2137
    %2139 = vmatmul.f32.gmra.mxu0 %v2112
    %v2140 = vpop.f32.mrf.mxu0
    %v2141 = vadd.f32 %v1296, %v2140
    %2142 = vdwg.mxu0
    %v2143 = vld [vmem:[%s57] sm:$0xff]
    %v2144 = vld [vmem:[%s57 + $0x8] sm:$0xff]
    %v2145 = vld [vmem:[%s57 + $0x10] sm:$0xff]
    %v2146 = vld [vmem:[%s57 + $0x18] sm:$0xff]
    %v2147 = vld [vmem:[%s59] sm:$0xff]
    %v2148 = vld [vmem:[%s59 + $0x8] sm:$0xff]
    %v2149 = vld [vmem:[%s59 + $0x10] sm:$0xff]
    %v2150 = vld [vmem:[%s59 + $0x18] sm:$0xff]
    %v2151 = vsel %vm1357, %v2132, 0.0
    %v2152 = vsel %vm1357, %v2135, 0.0
    %v2153 = vadd.f32 %v2151, %v2152
    %v2154 = vsel %vm1357, %v2138, 0.0
    %v2155 = vadd.f32 %v2153, %v2154
    %v2156 = vsel %vm1357, %v2141, 0.0
    %v2157 = vadd.f32 %v2155, %v2156
    %v2158 = vrot.slane %v2157, 4
    %v2159 = vadd.f32 %v2157, %v2158
    %v2160 = vrot.slane %v2159, 2
    %v2161 = vadd.f32 %v2159, %v2160
    %v2162 = vrot.slane %v2161, 1
    %v2163 = vadd.f32 %v2161, %v2162
    %v2164 = vmul.f32 %v2163, %v1377
    %v2165 = vsub.f32 %v2132, %v2164
    %v2166 = vsub.f32 %v2135, %v2164
    %v2167 = vsub.f32 %v2138, %v2164
    %v2168 = vsub.f32 %v2141, %v2164
    %v2169 = vmul.f32 %v2165, %v2165
    %v2170 = vmul.f32 %v2166, %v2166
    %v2171 = vmul.f32 %v2167, %v2167
    %v2172 = vmul.f32 %v2168, %v2168
    %v2173 = vsel %vm1357, %v2169, 0.0
    %v2174 = vsel %vm1357, %v2170, 0.0
    %v2175 = vadd.f32 %v2173, %v2174
    %v2176 = vsel %vm1357, %v2171, 0.0
    %v2177 = vadd.f32 %v2175, %v2176
    %v2178 = vsel %vm1357, %v2172, 0.0
    %v2179 = vadd.f32 %v2177, %v2178
    %v2180 = vrot.slane %v2179, 4
    %v2181 = vadd.f32 %v2179, %v2180
    %v2182 = vrot.slane %v2181, 2
    %v2183 = vadd.f32 %v2181, %v2182
    %v2184 = vrot.slane %v2183, 1
    %v2185 = vadd.f32 %v2183, %v2184
    %v2186 = vmul.f32 %v2185, %v1377
    %v2187 = vadd.f32 %v2186, 1e-05
    %v2188 = vrsqrt.pop %v2187
    %v2189 = vmul.f32 %v2188, %v2187
    %v2190 = vmul.f32 %v2189, %v2188
    %v2191 = vmul.f32 0.5, %v2190
    %v2192 = vsub.f32 1.5, %v2191
    %v2193 = vmul.f32 %v2188, %v2192
    %vm2194 = vweird.f32 %v2187
    %vm2195 = vweird.f32 %v2188
    %vm2196 = vmor %vm2194, %vm2195
    %v2197 = vsel %vm2196, %v2188, %v2193
    %v2198 = vmul.f32 %v2165, %v2197
    %v2199 = vmul.f32 %v2166, %v2197
    %v2200 = vmul.f32 %v2167, %v2197
    %v2201 = vmul.f32 %v2168, %v2197
    %2203 = vset.pattern.permute.xlu0 0
    %2204 = vperm.xlu0 %2203, %v2143
    %v2205 = vpop.permute.xlu0 %2204
    %2208 = vset.pattern.permute.xlu0 0
    %2209 = vperm.xlu0 %2208, %v2144
    %v2210 = vpop.permute.xlu0 %2209
    %2213 = vset.pattern.permute.xlu0 0
    %2214 = vperm.xlu0 %2213, %v2145
    %v2215 = vpop.permute.xlu0 %2214
    %2218 = vset.pattern.permute.xlu0 0
    %2219 = vperm.xlu0 %2218, %v2146
    %v2220 = vpop.permute.xlu0 %2219
    %v2222 = vmul.f32 %v2198, %v2205
    %v2223 = vmul.f32 %v2199, %v2210
    %v2224 = vmul.f32 %v2200, %v2215
    %v2225 = vmul.f32 %v2201, %v2220
    %2227 = vset.pattern.permute.xlu0 0
    %2228 = vperm.xlu0 %2227, %v2147
    %v2229 = vpop.permute.xlu0 %2228
    %2232 = vset.pattern.permute.xlu0 0
    %2233 = vperm.xlu0 %2232, %v2148
    %v2234 = vpop.permute.xlu0 %2233
    %2237 = vset.pattern.permute.xlu0 0
    %2238 = vperm.xlu0 %2237, %v2149
    %v2239 = vpop.permute.xlu0 %2238
    %2242 = vset.pattern.permute.xlu0 0
    %2243 = vperm.xlu0 %2242, %v2150
    %v2244 = vpop.permute.xlu0 %2243
    %v2246 = vadd.f32 %v2222, %v2229
    %v2247 = vadd.f32 %v2223, %v2234
    %v2248 = vadd.f32 %v2224, %v2239
    %v2249 = vadd.f32 %v2225, %v2244
    %v2250 = vxor.u32 %v2246, 2147483648
    %v2251 = vxor.u32 %v2247, 2147483648
    %v2252 = vxor.u32 %v2248, 2147483648
    %v2253 = vxor.u32 %v2249, 2147483648
    %v2254 = vmul.f32 %v2250, 1.442695
    %v2255 = vpow.pop %v2254
    %v2256 = vmul.f32 %v2251, 1.442695
    %v2257 = vpow.pop %v2256
    %v2258 = vmul.f32 %v2252, 1.442695
    %v2259 = vpow.pop %v2258
    %v2260 = vmul.f32 %v2253, 1.442695
    %v2261 = vpow.pop %v2260
    %v2262 = vadd.f32 %v2255, 1.0
    %v2263 = vadd.f32 %v2257, 1.0
    %v2264 = vadd.f32 %v2259, 1.0
    %v2265 = vadd.f32 %v2261, 1.0
    %v2266 = vrcp.pop %v2262
    %v2267 = vmul.f32 %v2262, %v2266
    %v2268 = vsub.f32 1.0, %v2267
    %v2269 = vmul.f32 %v2266, %v2268
    %v2270 = vadd.f32 %v2266, %v2269
    %vm2271 = vweird.f32 %v2262
    %vm2272 = vweird.f32 %v2266
    %vm2273 = vmor %vm2271, %vm2272
    %v2274 = vsel %vm2273, %v2266, %v2270
    %v2275 = vand.u32 2147483647, %v2262
    %vm2276 = vcmp.eq.f32.partialorder %v2275, 8.507059e+37
    %v2277 = vand.u32 %v2262, 2147483648
    %v2278 = vor.u32 1.1754944e-38, %v2277
    %v2279 = vsel %vm2276, %v2278, %v2274
    %v2280 = vmul.f32 1.0, %v2279
    %v2281 = vrcp.pop %v2263
    %v2282 = vmul.f32 %v2263, %v2281
    %v2283 = vsub.f32 1.0, %v2282
    %v2284 = vmul.f32 %v2281, %v2283
    %v2285 = vadd.f32 %v2281, %v2284
    %vm2286 = vweird.f32 %v2263
    %vm2287 = vweird.f32 %v2281
    %vm2288 = vmor %vm2286, %vm2287
    %v2289 = vsel %vm2288, %v2281, %v2285
    %v2290 = vand.u32 2147483647, %v2263
    %vm2291 = vcmp.eq.f32.partialorder %v2290, 8.507059e+37
    %v2292 = vand.u32 %v2263, 2147483648
    %v2293 = vor.u32 1.1754944e-38, %v2292
    %v2294 = vsel %vm2291, %v2293, %v2289
    %v2295 = vmul.f32 1.0, %v2294
    %v2296 = vrcp.pop %v2264
    %v2297 = vmul.f32 %v2264, %v2296
    %v2298 = vsub.f32 1.0, %v2297
    %v2299 = vmul.f32 %v2296, %v2298
    %v2300 = vadd.f32 %v2296, %v2299
    %vm2301 = vweird.f32 %v2264
    %vm2302 = vweird.f32 %v2296
    %vm2303 = vmor %vm2301, %vm2302
    %v2304 = vsel %vm2303, %v2296, %v2300
    %v2305 = vand.u32 2147483647, %v2264
    %vm2306 = vcmp.eq.f32.partialorder %v2305, 8.507059e+37
    %v2307 = vand.u32 %v2264, 2147483648
    %v2308 = vor.u32 1.1754944e-38, %v2307
    %v2309 = vsel %vm2306, %v2308, %v2304
    %v2310 = vmul.f32 1.0, %v2309
    %v2311 = vrcp.pop %v2265
    %v2312 = vmul.f32 %v2265, %v2311
    %v2313 = vsub.f32 1.0, %v2312
    %v2314 = vmul.f32 %v2311, %v2313
    %v2315 = vadd.f32 %v2311, %v2314
    %vm2316 = vweird.f32 %v2265
    %vm2317 = vweird.f32 %v2311
    %vm2318 = vmor %vm2316, %vm2317
    %v2319 = vsel %vm2318, %v2311, %v2315
    %v2320 = vand.u32 2147483647, %v2265
    %vm2321 = vcmp.eq.f32.partialorder %v2320, 8.507059e+37
    %v2322 = vand.u32 %v2265, 2147483648
    %v2323 = vor.u32 1.1754944e-38, %v2322
    %v2324 = vsel %vm2321, %v2323, %v2319
    %v2325 = vmul.f32 1.0, %v2324
    %v2326 = vmul.f32 %v2246, %v2280
    %v2327 = vmul.f32 %v2247, %v2295
    %v2328 = vmul.f32 %v2248, %v2310
    %v2329 = vmul.f32 %v2249, %v2325
    %v2330 = vadd.f32 %v2326, %v1540
    %v2331 = vadd.f32 %v2327, %v1541
    %v2332 = vadd.f32 %v2328, %v1542
    %v2333 = vadd.f32 %v2329, %v1543
    %v2334 = vld [vmem:[%s61] sm:$0xff]
    %v2335 = vld [vmem:[%s61 + $0x8] sm:$0xff]
    %v2336 = vld [vmem:[%s61 + $0x10] sm:$0xff]
    %v2337 = vld [vmem:[%s61 + $0x18] sm:$0xff]
    %v2338 = vld [vmem:[%s63] sm:$0xff]
    %v2339 = vld [vmem:[%s63 + $0x8] sm:$0xff]
    %v2340 = vld [vmem:[%s63 + $0x10] sm:$0xff]
    %v2341 = vld [vmem:[%s63 + $0x18] sm:$0xff]
    %2343 = vset.pattern.permute.xlu0 0
    %2344 = vperm.xlu0 %2343, %v2338
    %v2345 = vpop.permute.xlu0 %2344
    %2348 = vset.pattern.permute.xlu0 0
    %2349 = vperm.xlu0 %2348, %v2339
    %v2350 = vpop.permute.xlu0 %2349
    %2353 = vset.pattern.permute.xlu0 0
    %2354 = vperm.xlu0 %2353, %v2340
    %v2355 = vpop.permute.xlu0 %2354
    %2358 = vset.pattern.permute.xlu0 0
    %2359 = vperm.xlu0 %2358, %v2341
    %v2360 = vpop.permute.xlu0 %2359
    %v2363 = vsel %vm815, %v2334, 0
    %v2366 = vsel %vm815, %v2335, 0
    %v2369 = vsel %vm815, %v2336, 0
    %v2372 = vsel %vm815, %v2337, 0
    %2374 = vmatpush.msra.mxu0 0.0
    %2375 = vmatpush.msra.mxu0 0.0
    %2376 = vmatpush.msra.mxu0 0.0
    %2377 = vmatpush.msra.mxu0 0.0
    %2378 = vmatpush.msra.mxu0 0.0
    %2379 = vmatpush.msra.mxu0 0.0
    %2380 = vmatpush.msra.mxu0 0.0
    %2381 = vmatpush.msra.mxu0 0.0
    %2382 = vmatpush.msra.mxu0 0.0
    %2383 = vmatpush.msra.mxu0 0.0
    %2384 = vmatpush.msra.mxu0 0.0
    %2385 = vmatpush.msra.mxu0 0.0
    %2386 = vmatpush.msra.mxu0 %v2333
    %2387 = vmatpush.msra.mxu0 %v2332
    %2388 = vmatpush.msra.mxu0 %v2331
    %2389 = vmatpush.msra.mxu0 %v2330
    %2390 = vmatmul.f32.gmra.mxu0 %v2363
    %v2391 = vpop.f32.mrf.mxu0
    %v2392 = vadd.f32 %v2345, %v2391
    %2393 = vmatmul.f32.gmra.mxu0 %v2366
    %v2394 = vpop.f32.mrf.mxu0
    %v2395 = vadd.f32 %v2350, %v2394
    %2396 = vmatmul.f32.gmra.mxu0 %v2369
    %v2397 = vpop.f32.mrf.mxu0
    %v2398 = vadd.f32 %v2355, %v2397
    %2399 = vmatmul.f32.gmra.mxu0 %v2372
    %v2400 = vpop.f32.mrf.mxu0
    %v2401 = vadd.f32 %v2360, %v2400
    %2402 = vdwg.mxu0
    %v2403 = vld [vmem:[%s65] sm:$0xff]
    %v2404 = vld [vmem:[%s65 + $0x8] sm:$0xff]
    %v2405 = vld [vmem:[%s65 + $0x10] sm:$0xff]
    %v2406 = vld [vmem:[%s65 + $0x18] sm:$0xff]
    %v2407 = vld [vmem:[%s67] sm:$0xff]
    %v2408 = vld [vmem:[%s67 + $0x8] sm:$0xff]
    %v2409 = vld [vmem:[%s67 + $0x10] sm:$0xff]
    %v2410 = vld [vmem:[%s67 + $0x18] sm:$0xff]
    %v2411 = vsel %vm1357, %v2392, 0.0
    %v2412 = vsel %vm1357, %v2395, 0.0
    %v2413 = vadd.f32 %v2411, %v2412
    %v2414 = vsel %vm1357, %v2398, 0.0
    %v2415 = vadd.f32 %v2413, %v2414
    %v2416 = vsel %vm1357, %v2401, 0.0
    %v2417 = vadd.f32 %v2415, %v2416
    %v2418 = vrot.slane %v2417, 4
    %v2419 = vadd.f32 %v2417, %v2418
    %v2420 = vrot.slane %v2419, 2
    %v2421 = vadd.f32 %v2419, %v2420
    %v2422 = vrot.slane %v2421, 1
    %v2423 = vadd.f32 %v2421, %v2422
    %v2424 = vmul.f32 %v2423, %v1377
    %v2425 = vsub.f32 %v2392, %v2424
    %v2426 = vsub.f32 %v2395, %v2424
    %v2427 = vsub.f32 %v2398, %v2424
    %v2428 = vsub.f32 %v2401, %v2424
    %v2429 = vmul.f32 %v2425, %v2425
    %v2430 = vmul.f32 %v2426, %v2426
    %v2431 = vmul.f32 %v2427, %v2427
    %v2432 = vmul.f32 %v2428, %v2428
    %v2433 = vsel %vm1357, %v2429, 0.0
    %v2434 = vsel %vm1357, %v2430, 0.0
    %v2435 = vadd.f32 %v2433, %v2434
    %v2436 = vsel %vm1357, %v2431, 0.0
    %v2437 = vadd.f32 %v2435, %v2436
    %v2438 = vsel %vm1357, %v2432, 0.0
    %v2439 = vadd.f32 %v2437, %v2438
    %v2440 = vrot.slane %v2439, 4
    %v2441 = vadd.f32 %v2439, %v2440
    %v2442 = vrot.slane %v2441, 2
    %v2443 = vadd.f32 %v2441, %v2442
    %v2444 = vrot.slane %v2443, 1
    %v2445 = vadd.f32 %v2443, %v2444
    %v2446 = vmul.f32 %v2445, %v1377
    %v2447 = vadd.f32 %v2446, 1e-05
    %v2448 = vrsqrt.pop %v2447
    %v2449 = vmul.f32 %v2448, %v2447
    %v2450 = vmul.f32 %v2449, %v2448
    %v2451 = vmul.f32 0.5, %v2450
    %v2452 = vsub.f32 1.5, %v2451
    %v2453 = vmul.f32 %v2448, %v2452
    %vm2454 = vweird.f32 %v2447
    %vm2455 = vweird.f32 %v2448
    %vm2456 = vmor %vm2454, %vm2455
    %v2457 = vsel %vm2456, %v2448, %v2453
    %v2458 = vmul.f32 %v2425, %v2457
    %v2459 = vmul.f32 %v2426, %v2457
    %v2460 = vmul.f32 %v2427, %v2457
    %v2461 = vmul.f32 %v2428, %v2457
    %2463 = vset.pattern.permute.xlu0 0
    %2464 = vperm.xlu0 %2463, %v2403
    %v2465 = vpop.permute.xlu0 %2464
    %2468 = vset.pattern.permute.xlu0 0
    %2469 = vperm.xlu0 %2468, %v2404
    %v2470 = vpop.permute.xlu0 %2469
    %2473 = vset.pattern.permute.xlu0 0
    %2474 = vperm.xlu0 %2473, %v2405
    %v2475 = vpop.permute.xlu0 %2474
    %2478 = vset.pattern.permute.xlu0 0
    %2479 = vperm.xlu0 %2478, %v2406
    %v2480 = vpop.permute.xlu0 %2479
    %v2482 = vmul.f32 %v2458, %v2465
    %v2483 = vmul.f32 %v2459, %v2470
    %v2484 = vmul.f32 %v2460, %v2475
    %v2485 = vmul.f32 %v2461, %v2480
    %2487 = vset.pattern.permute.xlu0 0
    %2488 = vperm.xlu0 %2487, %v2407
    %v2489 = vpop.permute.xlu0 %2488
    %2492 = vset.pattern.permute.xlu0 0
    %2493 = vperm.xlu0 %2492, %v2408
    %v2494 = vpop.permute.xlu0 %2493
    %2497 = vset.pattern.permute.xlu0 0
    %2498 = vperm.xlu0 %2497, %v2409
    %v2499 = vpop.permute.xlu0 %2498
    %2502 = vset.pattern.permute.xlu0 0
    %2503 = vperm.xlu0 %2502, %v2410
    %v2504 = vpop.permute.xlu0 %2503
    %v2506 = vadd.f32 %v2482, %v2489
    %v2507 = vadd.f32 %v2483, %v2494
    %v2508 = vadd.f32 %v2484, %v2499
    %v2509 = vadd.f32 %v2485, %v2504
    %v2510 = vxor.u32 %v2506, 2147483648
    %v2511 = vxor.u32 %v2507, 2147483648
    %v2512 = vxor.u32 %v2508, 2147483648
    %v2513 = vxor.u32 %v2509, 2147483648
    %v2514 = vmul.f32 %v2510, 1.442695
    %v2515 = vpow.pop %v2514
    %v2516 = vmul.f32 %v2511, 1.442695
    %v2517 = vpow.pop %v2516
    %v2518 = vmul.f32 %v2512, 1.442695
    %v2519 = vpow.pop %v2518
    %v2520 = vmul.f32 %v2513, 1.442695
    %v2521 = vpow.pop %v2520
    %v2522 = vadd.f32 %v2515, 1.0
    %v2523 = vadd.f32 %v2517, 1.0
    %v2524 = vadd.f32 %v2519, 1.0
    %v2525 = vadd.f32 %v2521, 1.0
    %v2526 = vrcp.pop %v2522
    %v2527 = vmul.f32 %v2522, %v2526
    %v2528 = vsub.f32 1.0, %v2527
    %v2529 = vmul.f32 %v2526, %v2528
    %v2530 = vadd.f32 %v2526, %v2529
    %vm2531 = vweird.f32 %v2522
    %vm2532 = vweird.f32 %v2526
    %vm2533 = vmor %vm2531, %vm2532
    %v2534 = vsel %vm2533, %v2526, %v2530
    %v2535 = vand.u32 2147483647, %v2522
    %vm2536 = vcmp.eq.f32.partialorder %v2535, 8.507059e+37
    %v2537 = vand.u32 %v2522, 2147483648
    %v2538 = vor.u32 1.1754944e-38, %v2537
    %v2539 = vsel %vm2536, %v2538, %v2534
    %v2540 = vmul.f32 1.0, %v2539
    %v2541 = vrcp.pop %v2523
    %v2542 = vmul.f32 %v2523, %v2541
    %v2543 = vsub.f32 1.0, %v2542
    %v2544 = vmul.f32 %v2541, %v2543
    %v2545 = vadd.f32 %v2541, %v2544
    %vm2546 = vweird.f32 %v2523
    %vm2547 = vweird.f32 %v2541
    %vm2548 = vmor %vm2546, %vm2547
    %v2549 = vsel %vm2548, %v2541, %v2545
    %v2550 = vand.u32 2147483647, %v2523
    %vm2551 = vcmp.eq.f32.partialorder %v2550, 8.507059e+37
    %v2552 = vand.u32 %v2523, 2147483648
    %v2553 = vor.u32 1.1754944e-38, %v2552
    %v2554 = vsel %vm2551, %v2553, %v2549
    %v2555 = vmul.f32 1.0, %v2554
    %v2556 = vrcp.pop %v2524
    %v2557 = vmul.f32 %v2524, %v2556
    %v2558 = vsub.f32 1.0, %v2557
    %v2559 = vmul.f32 %v2556, %v2558
    %v2560 = vadd.f32 %v2556, %v2559
    %vm2561 = vweird.f32 %v2524
    %vm2562 = vweird.f32 %v2556
    %vm2563 = vmor %vm2561, %vm2562
    %v2564 = vsel %vm2563, %v2556, %v2560
    %v2565 = vand.u32 2147483647, %v2524
    %vm2566 = vcmp.eq.f32.partialorder %v2565, 8.507059e+37
    %v2567 = vand.u32 %v2524, 2147483648
    %v2568 = vor.u32 1.1754944e-38, %v2567
    %v2569 = vsel %vm2566, %v2568, %v2564
    %v2570 = vmul.f32 1.0, %v2569
    %v2571 = vrcp.pop %v2525
    %v2572 = vmul.f32 %v2525, %v2571
    %v2573 = vsub.f32 1.0, %v2572
    %v2574 = vmul.f32 %v2571, %v2573
    %v2575 = vadd.f32 %v2571, %v2574
    %vm2576 = vweird.f32 %v2525
    %vm2577 = vweird.f32 %v2571
    %vm2578 = vmor %vm2576, %vm2577
    %v2579 = vsel %vm2578, %v2571, %v2575
    %v2580 = vand.u32 2147483647, %v2525
    %vm2581 = vcmp.eq.f32.partialorder %v2580, 8.507059e+37
    %v2582 = vand.u32 %v2525, 2147483648
    %v2583 = vor.u32 1.1754944e-38, %v2582
    %v2584 = vsel %vm2581, %v2583, %v2579
    %v2585 = vmul.f32 1.0, %v2584
    %v2586 = vmul.f32 %v2506, %v2540
    %v2587 = vmul.f32 %v2507, %v2555
    %v2588 = vmul.f32 %v2508, %v2570
    %v2589 = vmul.f32 %v2509, %v2585
    %v2590 = vld [vmem:[%s69] sm:$0xf]
    %v2591 = vld [vmem:[%s71] sm:$0xf]
    %2593 = vset.pattern.permute.xlu0 0
    %2594 = vperm.xlu0 %2593, %v2591
    %v2595 = vpop.permute.xlu0 %2594
    %v2598 = vsel %vm815, %v2590, 0
    %2600 = vmatpush.msra.mxu0 0.0
    %2601 = vmatpush.msra.mxu0 0.0
    %2602 = vmatpush.msra.mxu0 0.0
    %2603 = vmatpush.msra.mxu0 0.0
    %2604 = vmatpush.msra.mxu0 0.0
    %2605 = vmatpush.msra.mxu0 0.0
    %2606 = vmatpush.msra.mxu0 0.0
    %2607 = vmatpush.msra.mxu0 0.0
    %2608 = vmatpush.msra.mxu0 0.0
    %2609 = vmatpush.msra.mxu0 0.0
    %2610 = vmatpush.msra.mxu0 0.0
    %2611 = vmatpush.msra.mxu0 0.0
    %2612 = vmatpush.msra.mxu0 %v2589
    %2613 = vmatpush.msra.mxu0 %v2588
    %2614 = vmatpush.msra.mxu0 %v2587
    %2615 = vmatpush.msra.mxu0 %v2586
    %2616 = vmatmul.f32.gmra.mxu0 %v2598
    %v2617 = vpop.f32.mrf.mxu0
    %v2618 = vadd.f32 %v2595, %v2617
    %2619 = vdwg.mxu0
    %vm2620 = vcmask 60416
    %2621 = vst.msk [vmem:[#allocation2] sm:$0xf] %vm2620, %v2618
    // Predicated region
    $region146: #{tpu_custom_call.1} parent=1 // pred_check
      _
    $region147: #{tpu_custom_call.1} parent=1 // pred_check_branch
      %2623 = sbr.rel (0) target = $region149
    $region148: #{tpu_custom_call.1} parent=1 // pred_region
      %2625 = vsyncadd [#allocation3], 0
      %s2627 = sshll.u32 [#allocation2], 4
      %s2628 = int_to_ptr.vmem [resolvable:$true] %s2627
      %s2629 = sshll.u32 %s73, 4
      %s2630 = int_to_ptr.hbm [resolvable:$true] %s2629
      %2632 = dma.vmem_to_hbm [thread:$0]  %s2628, 64, %s2630, [#allocation3]
    $region149: #{tpu_custom_call.1} parent=1 // pred_fallthru
      _
    // Predicated region
    $region150: #{tpu_custom_call.1} parent=1 // pred_check
      _
    $region151: #{tpu_custom_call.1} parent=1 // pred_check_branch
      %2634 = sbr.rel (0) target = $region153
    $region152: #{tpu_custom_call.1} parent=1 // pred_region
      %2636 = dma.done [#allocation3], 64
    $region153: #{tpu_custom_call.1} parent=1 // pred_fallthru
      _
    %2637 = vsyncpa [#allocation3], 1

</llo_original>
